<compile_context>
chip_gen: v7x
topology: tpu7x:2x2x1
jax: 0.10.0
libtpu: 0.0.40
codegen_flags: <defaults>
</compile_context>

<pallas_src>
import functools
import math

import jax
import jax.numpy as jnp
from jax.experimental import pallas as pl
from jax.experimental.pallas import tpu as pltpu

_SLOT = 8  # sublane-aligned rows reserved per timestep in the sequence scratch


# ----------------------------------------------------------------------------
# Pallas kernel
# ----------------------------------------------------------------------------
def enhanced_lstm_kernel(
    x_ref,        # ((T+1)*B, I) time-major rows (row t*B+b = x[b,t,:]) + zero step
    wih8_ref,     # (I, 8H)  layer-0 W_ih scattered into interleaved gate columns
    b8_ref,       # (1, 8H)  both layers' biases, interleaved gate columns
    wcomb_ref,    # (2H, 8H) fused recurrent matrix [[whh0|wih1],[0|whh1]]
    wattn_ref,    # (1, 2H)  [zeros | attention.weight]
    battn_ref,    # (1, 1)
    wproj_ref,    # (I, H)
    bproj_ref,    # (1, H)
    wfc_ref,      # (H, O)
    bfc_ref,      # (1, O)
    out_ref,      # (B, O)
    seq_ref,      # scratch (T*_SLOT, 2H): per-step [h0|h1]; only h1 lanes consumed
    *,
    seq_len,
    batch,
):
    T, B = seq_len, batch
    H2 = wcomb_ref.shape[0]          # 2H
    H = H2 // 2

    # Pad rows of the sequence scratch feed the attention epilogue — zero once.
    seq_ref[...] = jnp.zeros_like(seq_ref)

    x2d = x_ref[...]                                              # ((T+1)*B, I)

    # Hoisted input-gate matmul for all timesteps, already in interleaved gate
    # order; layer-1 columns carry only b1 (their weight columns are zero).
    xadd = jnp.dot(x2d, wih8_ref[...],
                   preferred_element_type=jnp.float32) + b8_ref[...]  # ((T+1)*B, 8H)
    xadd_steps = [xadd[k * B:(k + 1) * B, :] for k in range(T + 1)]

    # g-gate lanes [4H, 6H): tanh(z) reconstructed as 2*sigmoid(2z)-1 (weights
    # pre-scaled by 2 in the wrapper).  Everything else is plain sigmoid.
    lane8 = jax.lax.broadcasted_iota(jnp.int32, (B, 8 * H), 1)
    g_mask = (lane8 >= 4 * H) & (lane8 < 6 * H)
    lane2 = jax.lax.broadcasted_iota(jnp.int32, (B, H2), 1)
    l0_mask = (lane2 < H).astype(jnp.float32)            # keep-layer-0-lanes mask

    wcomb = wcomb_ref[...]

    h_state = jnp.zeros((B, H2), jnp.float32)            # [h0 | h1]
    c_state = jnp.zeros((B, H2), jnp.float32)            # [c0 | c1]

    # Wavefront recurrence: iteration k advances layer 0 to step k and layer 1
    # to step k-1 with a single MXU dot on the serial chain.
    for k in range(T + 1):                               # static unroll (T small)
        gates = xadd_steps[k]                            # (B, 8H)
        if k > 0:
            gates = gates + jnp.dot(h_state, wcomb,
                                    preferred_element_type=jnp.float32)
        sg = jax.nn.sigmoid(gates)                       # one EUP pass over 8H
        act = jnp.where(g_mask, 2.0 * sg - 1.0, sg)      # masked FMA (VALU)
        i_b = act[:, 0 * H2:1 * H2]
        f_b = act[:, 1 * H2:2 * H2]
        g_b = act[:, 2 * H2:3 * H2]
        o_b = act[:, 3 * H2:4 * H2]
        c_state = f_b * c_state + i_b * g_b
        h_state = o_b * jnp.tanh(c_state)
        if k == 0:
            # Layer-1 lanes of the k=0 update are a bogus "step -1": reset to 0
            # so the real layer-1 step 0 (at k=1) starts from zero state.
            h_state = h_state * l0_mask
            c_state = c_state * l0_mask
        else:
            # Slot (k-1): layer-1 lanes hold h1_{k-1}; layer-0 lanes are junk
            # for the epilogue and are masked out there.  Aligned-slot store.
            seq_ref[(k - 1) * _SLOT:(k - 1) * _SLOT + B, :] = h_state

    # ---- attention: softmax over time of tanh(h1 @ Wattn^T + b) ------------
    seq = seq_ref[...]                                                # (T*8, 2H)
    # wattn_ext has zeros on the layer-0 lanes, so scores depend on h1 only.
    scores = jnp.tanh(
        jnp.sum(seq * wattn_ref[...], axis=-1, keepdims=True) + battn_ref[...])
    e = jnp.exp(scores)                                  # in [e^-1, e]; max-free safe

    # Per-batch time-sum selector built in-kernel; zero columns on pad rows.
    rows = jax.lax.broadcasted_iota(jnp.int32, (B, T * _SLOT), 0)
    cols = jax.lax.broadcasted_iota(jnp.int32, (B, T * _SLOT), 1)
    sel = ((cols & (_SLOT - 1)) == rows).astype(jnp.float32)          # (B, T*8)

    weighted = jnp.dot(sel, seq * e, preferred_element_type=jnp.float32)  # (B, 2H)
    denom = jnp.dot(sel, e, preferred_element_type=jnp.float32)           # (B, 1)
    attended = weighted[:, H:H2] / denom                 # exact reciprocal (review)

    # ---- residual path from the last real time step -------------------------
    x_last = x2d[(T - 1) * B:T * B, :]                                 # (B, I)
    resid = jnp.dot(x_last, wproj_ref[...],
                    preferred_element_type=jnp.float32) + bproj_ref[...]
    combined = attended + 0.1 * resid
    # TODO(synk): nn.Dropout omitted (identity in eval/inference mode).

    out_ref[...] = (
        jnp.dot(combined, wfc_ref[...], preferred_element_type=jnp.float32)
        + bfc_ref[...]
    ).astype(out_ref.dtype)


# ----------------------------------------------------------------------------
# Wrapper: builds the fused / interleaved / g-scaled weight layouts.
# ----------------------------------------------------------------------------
def enhanced_lstm_forward(x, params):
    """x: (B, T, I) float32 -> (B, output_length) float32."""
    B, T, I = x.shape
    H = params["whh0"].shape[0]
    O = params["wfc"].shape[1]
    assert B <= _SLOT, "kernel assumes batch <= 8 (one sublane slot per step)"

    def gate_blocks(w):
        # split last dim (4H, torch gate order i,f,g,o); scale g by 2 so the
        # kernel can use tanh(z) = 2*sigmoid(2z) - 1.
        return (w[..., 0:H], w[..., H:2 * H],
                2.0 * w[..., 2 * H:3 * H], w[..., 3 * H:4 * H])

    i0w, f0w, g0w, o0w = gate_blocks(params["whh0"])    # (H, H) each
    i1x, f1x, g1x, o1x = gate_blocks(params["wih1"])    # (H, H)
    i1h, f1h, g1h, o1h = gate_blocks(params["whh1"])    # (H, H)
    zH = jnp.zeros((H, H), jnp.float32)
    # Fused recurrent matrix, interleaved columns [i0 i1 f0 f1 g0 g1 o0 o1]:
    #   rows [0,H)  multiply h0 (layer-0 recurrence + layer-1 input)
    #   rows [H,2H) multiply h1 (layer-1 recurrence only)
    wcomb = jnp.concatenate([
        jnp.concatenate([i0w, i1x, f0w, f1x, g0w, g1x, o0w, o1x], axis=1),
        jnp.concatenate([zH, i1h, zH, f1h, zH, g1h, zH, o1h], axis=1),
    ], axis=0)                                                       # (2H, 8H)

    i0i, f0i, g0i, o0i = gate_blocks(params["wih0"])    # (I, H)
    zI = jnp.zeros((I, H), jnp.float32)
    wih8 = jnp.concatenate([i0i, zI, f0i, zI, g0i, zI, o0i, zI], axis=1)  # (I, 8H)

    bi0, bf0, bg0, bo0 = gate_blocks(params["b0"])      # (1, H)
    bi1, bf1, bg1, bo1 = gate_blocks(params["b1"])
    b8 = jnp.concatenate([bi0, bi1, bf0, bf1, bg0, bg1, bo0, bo1], axis=1)  # (1, 8H)

    wattn_ext = jnp.concatenate(
        [jnp.zeros((1, H), jnp.float32), params["wattn"]], axis=1)   # (1, 2H)

    # Time-major 2-D input (row = t*B + b) plus one trailing all-zero step so
    # the wavefront's final iteration (layer-1 step T-1) gets its bias row.
    x2d = jnp.transpose(x, (1, 0, 2)).reshape(T * B, I)
    x2d_ext = jnp.concatenate([x2d, jnp.zeros((B, I), jnp.float32)], axis=0)

    args = (
        x2d_ext, wih8, b8, wcomb, wattn_ext, params["battn"],
        params["wproj"], params["bproj"], params["wfc"], params["bfc"],
    )
    vspec = pl.BlockSpec(memory_space=pltpu.MemorySpace.VMEM)
    kernel = functools.partial(enhanced_lstm_kernel, seq_len=T, batch=B)
    return pl.pallas_call(
        kernel,
        out_shape=jax.ShapeDtypeStruct((B, O), jnp.float32),
        in_specs=[vspec] * len(args),
        out_specs=vspec,
        scratch_shapes=[
            pltpu.VMEM((T * _SLOT, 2 * H), jnp.float32),  # padded hidden sequence
        ],
    )(*args)


# ----------------------------------------------------------------------------
# Deterministic parameter init (mirrors init_weights: xavier_uniform for
# W_ih / fc / attention / projection, orthogonal for W_hh, zero biases).
# ----------------------------------------------------------------------------
def _xavier_uniform(key, shape):  # torch-style (out, in)
    fan_out, fan_in = shape
    a = math.sqrt(6.0 / (fan_in + fan_out))
    return jax.random.uniform(key, shape, jnp.float32, -a, a)


def _orthogonal(key, shape):  # torch-style (out, in)
    rows, cols = shape
    n, m = max(rows, cols), min(rows, cols)
    a = jax.random.normal(key, (n, m), jnp.float32)
    q, r = jnp.linalg.qr(a)
    q = q * jnp.sign(jnp.diagonal(r))[None, :]
    if rows < cols:
        q = q.T
    return q[:rows, :cols].astype(jnp.float32)


def init_params(key, input_size, hidden_size, output_length):
    I, H, O = input_size, hidden_size, output_length
    ks = jax.random.split(key, 7)
    return dict(
        wih0=_xavier_uniform(ks[0], (4 * H, I)).T,      # (I, 4H)
        whh0=_orthogonal(ks[1], (4 * H, H)).T,          # (H, 4H)
        b0=jnp.zeros((1, 4 * H), jnp.float32),
        wih1=_xavier_uniform(ks[2], (4 * H, H)).T,      # (H, 4H)
        whh1=_orthogonal(ks[3], (4 * H, H)).T,          # (H, 4H)
        b1=jnp.zeros((1, 4 * H), jnp.float32),
        wattn=_xavier_uniform(ks[4], (1, H)),           # (1, H)
        battn=jnp.zeros((1, 1), jnp.float32),
        wproj=_xavier_uniform(ks[5], (H, I)).T,         # (I, H)
        bproj=jnp.zeros((1, H), jnp.float32),
        wfc=_xavier_uniform(ks[6], (O, H)).T,           # (H, O)
        bfc=jnp.zeros((1, O), jnp.float32),
    )


# ----------------------------------------------------------------------------
# Pure-JAX reference (mirrors the PyTorch forward) for a correctness check.
# ----------------------------------------------------------------------------
def reference_forward(x, params):
    B, T, _ = x.shape
    H = params["whh0"].shape[0]

    def cell(x_t, h, c, wih, whh, b):
        g = x_t @ wih + h @ whh + b
        i = jax.nn.sigmoid(g[:, :H])
        f = jax.nn.sigmoid(g[:, H:2 * H])
        gg = jnp.tanh(g[:, 2 * H:3 * H])
        o = jax.nn.sigmoid(g[:, 3 * H:])
        c = f * c + i * gg
        h = o * jnp.tanh(c)
        return h, c

    h0 = c0 = h1 = c1 = jnp.zeros((B, H), jnp.float32)
    outs = []
    for t in range(T):
        h0, c0 = cell(x[:, t, :], h0, c0, params["wih0"], params["whh0"], params["b0"])
        h1, c1 = cell(h0, h1, c1, params["wih1"], params["whh1"], params["b1"])
        outs.append(h1)
    lstm_out = jnp.stack(outs, axis=1)                               # (B, T, H)

    scores = jnp.tanh(lstm_out @ params["wattn"].T + params["battn"])  # (B, T, 1)
    attn = jax.nn.softmax(scores, axis=1)
    attended = jnp.sum(lstm_out * attn, axis=1)                      # (B, H)
    resid = x[:, -1, :] @ params["wproj"] + params["bproj"]
    combined = attended + 0.1 * resid
    return combined @ params["wfc"] + params["bfc"]


if __name__ == "__main__":
    # Small shapes consistent with the module: batch=2, seq=8, input=8,
    # hidden=32 (so 8H = 256 = one v6e/v7x MXU pass), output_length=16.
    B, T, I, H, O = 2, 8, 8, 32, 16

    root = jax.random.PRNGKey(0)
    k_params, k_x = jax.random.split(root)
    params = init_params(k_params, I, H, O)
    x = jax.random.normal(k_x, (B, T, I), jnp.float32)

    out = enhanced_lstm_forward(x, params)
    out = jax.block_until_ready(out)
    assert out.shape == (B, O)

    ref = reference_forward(x, params)
    # All-f32 path with an exact softmax divide; tolerance still catches any
    # layout / gate-order / wavefront-indexing bug (those give O(0.1+) errors).
    assert jnp.max(jnp.abs(out - ref)) < 2e-3, "mismatch vs JAX reference"

    print("KERNEL_OK")
</pallas_src>

<mosaic_0001>
module attributes {stable_mosaic.version = 11 : i64} {
  func.func @enhanced_lstm_kernel(%arg0: memref<18x8xf32, #tpu.memory_space<vmem>>, %arg1: memref<8x256xf32, #tpu.memory_space<vmem>>, %arg2: memref<1x256xf32, #tpu.memory_space<vmem>>, %arg3: memref<64x256xf32, #tpu.memory_space<vmem>>, %arg4: memref<1x64xf32, #tpu.memory_space<vmem>>, %arg5: memref<1x1xf32, #tpu.memory_space<vmem>>, %arg6: memref<8x32xf32, #tpu.memory_space<vmem>>, %arg7: memref<1x32xf32, #tpu.memory_space<vmem>>, %arg8: memref<32x16xf32, #tpu.memory_space<vmem>>, %arg9: memref<1x16xf32, #tpu.memory_space<vmem>>, %arg10: memref<2x16xf32, #tpu.memory_space<vmem>>, %arg11: memref<64x64xf32, #tpu.memory_space<vmem>>) attributes {dimension_semantics = [], scalar_prefetch = 0 : i64, scratch_operands = 1 : i64, tpu.core_type = #tpu.core_type<tc>} {
    %cst = arith.constant 0.000000e+00 : f32
    %0 = vector.broadcast %cst : f32 to vector<64x64xf32>
    %c0 = arith.constant 0 : index
    %c0_0 = arith.constant 0 : index
    %1 = vector.load %arg11[%c0, %c0_0] : memref<64x64xf32, #tpu.memory_space<vmem>>, vector<64x64xf32>
    tpu.vector_store %arg11[%c0, %c0_0], %0 {strides = array<i32>} : memref<64x64xf32, #tpu.memory_space<vmem>>, vector<64x64xf32>,
    %c0_1 = arith.constant 0 : index
    %c0_2 = arith.constant 0 : index
    %2 = vector.load %arg0[%c0_1, %c0_2] : memref<18x8xf32, #tpu.memory_space<vmem>>, vector<18x8xf32>
    %c0_3 = arith.constant 0 : index
    %c0_4 = arith.constant 0 : index
    %3 = vector.load %arg1[%c0_3, %c0_4] : memref<8x256xf32, #tpu.memory_space<vmem>>, vector<8x256xf32>
    %cst_5 = arith.constant dense<0.000000e+00> : vector<18x256xf32>
    %4 = tpu.matmul %2, %3, %cst_5 {dimension_numbers = #tpu.dot_dimension_numbers<[1], [0], [0], [1], [0, 0, 1, 1], [], []>} : vector<18x8xf32>, vector<8x256xf32>, vector<18x256xf32> -> vector<18x256xf32>
    %c0_6 = arith.constant 0 : index
    %c0_7 = arith.constant 0 : index
    %5 = vector.load %arg2[%c0_6, %c0_7] : memref<1x256xf32, #tpu.memory_space<vmem>>, vector<1x256xf32>
    %6 = vector.broadcast %5 : vector<1x256xf32> to vector<18x256xf32>
    %7 = arith.addf %4, %6 : vector<18x256xf32>
    %8 = vector.extract_strided_slice %7 {offsets = [0, 0], sizes = [2, 256], strides = [1, 1]} : vector<18x256xf32> to vector<2x256xf32>
    %9 = vector.extract_strided_slice %7 {offsets = [2, 0], sizes = [2, 256], strides = [1, 1]} : vector<18x256xf32> to vector<2x256xf32>
    %10 = vector.extract_strided_slice %7 {offsets = [4, 0], sizes = [2, 256], strides = [1, 1]} : vector<18x256xf32> to vector<2x256xf32>
    %11 = vector.extract_strided_slice %7 {offsets = [6, 0], sizes = [2, 256], strides = [1, 1]} : vector<18x256xf32> to vector<2x256xf32>
    %12 = vector.extract_strided_slice %7 {offsets = [8, 0], sizes = [2, 256], strides = [1, 1]} : vector<18x256xf32> to vector<2x256xf32>
    %13 = vector.extract_strided_slice %7 {offsets = [10, 0], sizes = [2, 256], strides = [1, 1]} : vector<18x256xf32> to vector<2x256xf32>
    %14 = vector.extract_strided_slice %7 {offsets = [12, 0], sizes = [2, 256], strides = [1, 1]} : vector<18x256xf32> to vector<2x256xf32>
    %15 = vector.extract_strided_slice %7 {offsets = [14, 0], sizes = [2, 256], strides = [1, 1]} : vector<18x256xf32> to vector<2x256xf32>
    %16 = vector.extract_strided_slice %7 {offsets = [16, 0], sizes = [2, 256], strides = [1, 1]} : vector<18x256xf32> to vector<2x256xf32>
    %17 = tpu.iota {dimensions = array<i32: 1>} : vector<2x256xi32>
    %c128_i32 = arith.constant 128 : i32
    %18 = vector.broadcast %c128_i32 : i32 to vector<2x256xi32>
    %19 = arith.cmpi sge, %17, %18 : vector<2x256xi32>
    %c192_i32 = arith.constant 192 : i32
    %20 = vector.broadcast %c192_i32 : i32 to vector<2x256xi32>
    %21 = arith.cmpi slt, %17, %20 : vector<2x256xi32>
    %22 = arith.andi %19, %21 : vector<2x256xi1>
    %23 = tpu.iota {dimensions = array<i32: 1>} : vector<2x64xi32>
    %c32_i32 = arith.constant 32 : i32
    %24 = vector.broadcast %c32_i32 : i32 to vector<2x64xi32>
    %25 = arith.cmpi slt, %23, %24 : vector<2x64xi32>
    %26 = arith.extui %25 : vector<2x64xi1> to vector<2x64xi32>
    %27 = arith.sitofp %26 : vector<2x64xi32> to vector<2x64xf32>
    %c0_8 = arith.constant 0 : index
    %c0_9 = arith.constant 0 : index
    %28 = vector.load %arg3[%c0_8, %c0_9] : memref<64x256xf32, #tpu.memory_space<vmem>>, vector<64x256xf32>
    %cst_10 = arith.constant 0.000000e+00 : f32
    %29 = vector.broadcast %cst_10 : f32 to vector<2x64xf32>
    %30 = arith.negf %8 : vector<2x256xf32>
    %31 = math.exp %30 : vector<2x256xf32>
    %cst_11 = arith.constant 1.000000e+00 : f32
    %32 = vector.broadcast %cst_11 : f32 to vector<2x256xf32>
    %33 = arith.addf %32, %31 : vector<2x256xf32>
    %34 = arith.divf %32, %33 : vector<2x256xf32>
    %cst_12 = arith.constant 2.000000e+00 : f32
    %35 = vector.broadcast %cst_12 : f32 to vector<2x256xf32>
    %36 = arith.mulf %35, %34 : vector<2x256xf32>
    %cst_13 = arith.constant 1.000000e+00 : f32
    %37 = vector.broadcast %cst_13 : f32 to vector<2x256xf32>
    %38 = arith.subf %36, %37 : vector<2x256xf32>
    %39 = arith.select %22, %38, %34 : vector<2x256xi1>, vector<2x256xf32>
    %40 = vector.extract_strided_slice %39 {offsets = [0, 0], sizes = [2, 64], strides = [1, 1]} : vector<2x256xf32> to vector<2x64xf32>
    %41 = vector.extract_strided_slice %39 {offsets = [0, 64], sizes = [2, 64], strides = [1, 1]} : vector<2x256xf32> to vector<2x64xf32>
    %42 = vector.extract_strided_slice %39 {offsets = [0, 128], sizes = [2, 64], strides = [1, 1]} : vector<2x256xf32> to vector<2x64xf32>
    %43 = vector.extract_strided_slice %39 {offsets = [0, 192], sizes = [2, 64], strides = [1, 1]} : vector<2x256xf32> to vector<2x64xf32>
    %44 = arith.mulf %41, %29 : vector<2x64xf32>
    %45 = arith.mulf %40, %42 : vector<2x64xf32>
    %46 = arith.addf %44, %45 : vector<2x64xf32>
    %47 = math.tanh %46 : vector<2x64xf32>
    %48 = arith.mulf %43, %47 : vector<2x64xf32>
    %49 = arith.mulf %48, %27 : vector<2x64xf32>
    %50 = arith.mulf %46, %27 : vector<2x64xf32>
    %cst_14 = arith.constant dense<0.000000e+00> : vector<2x256xf32>
    %51 = tpu.matmul %49, %28, %cst_14 {dimension_numbers = #tpu.dot_dimension_numbers<[1], [0], [0], [1], [0, 0, 1, 1], [], []>} : vector<2x64xf32>, vector<64x256xf32>, vector<2x256xf32> -> vector<2x256xf32>
    %52 = arith.addf %9, %51 : vector<2x256xf32>
    %53 = arith.negf %52 : vector<2x256xf32>
    %54 = math.exp %53 : vector<2x256xf32>
    %cst_15 = arith.constant 1.000000e+00 : f32
    %55 = vector.broadcast %cst_15 : f32 to vector<2x256xf32>
    %56 = arith.addf %55, %54 : vector<2x256xf32>
    %57 = arith.divf %55, %56 : vector<2x256xf32>
    %cst_16 = arith.constant 2.000000e+00 : f32
    %58 = vector.broadcast %cst_16 : f32 to vector<2x256xf32>
    %59 = arith.mulf %58, %57 : vector<2x256xf32>
    %cst_17 = arith.constant 1.000000e+00 : f32
    %60 = vector.broadcast %cst_17 : f32 to vector<2x256xf32>
    %61 = arith.subf %59, %60 : vector<2x256xf32>
    %62 = arith.select %22, %61, %57 : vector<2x256xi1>, vector<2x256xf32>
    %63 = vector.extract_strided_slice %62 {offsets = [0, 0], sizes = [2, 64], strides = [1, 1]} : vector<2x256xf32> to vector<2x64xf32>
    %64 = vector.extract_strided_slice %62 {offsets = [0, 64], sizes = [2, 64], strides = [1, 1]} : vector<2x256xf32> to vector<2x64xf32>
    %65 = vector.extract_strided_slice %62 {offsets = [0, 128], sizes = [2, 64], strides = [1, 1]} : vector<2x256xf32> to vector<2x64xf32>
    %66 = vector.extract_strided_slice %62 {offsets = [0, 192], sizes = [2, 64], strides = [1, 1]} : vector<2x256xf32> to vector<2x64xf32>
    %67 = arith.mulf %64, %50 : vector<2x64xf32>
    %68 = arith.mulf %63, %65 : vector<2x64xf32>
    %69 = arith.addf %67, %68 : vector<2x64xf32>
    %70 = math.tanh %69 : vector<2x64xf32>
    %71 = arith.mulf %66, %70 : vector<2x64xf32>
    %c0_18 = arith.constant 0 : index
    %c0_19 = arith.constant 0 : index
    %72 = vector.load %arg11[%c0_18, %c0_19] : memref<64x64xf32, #tpu.memory_space<vmem>>, vector<2x64xf32>
    tpu.vector_store %arg11[%c0_18, %c0_19], %71 {strides = array<i32>} : memref<64x64xf32, #tpu.memory_space<vmem>>, vector<2x64xf32>,
    %cst_20 = arith.constant dense<0.000000e+00> : vector<2x256xf32>
    %73 = tpu.matmul %71, %28, %cst_20 {dimension_numbers = #tpu.dot_dimension_numbers<[1], [0], [0], [1], [0, 0, 1, 1], [], []>} : vector<2x64xf32>, vector<64x256xf32>, vector<2x256xf32> -> vector<2x256xf32>
    %74 = arith.addf %10, %73 : vector<2x256xf32>
    %75 = arith.negf %74 : vector<2x256xf32>
    %76 = math.exp %75 : vector<2x256xf32>
    %cst_21 = arith.constant 1.000000e+00 : f32
    %77 = vector.broadcast %cst_21 : f32 to vector<2x256xf32>
    %78 = arith.addf %77, %76 : vector<2x256xf32>
    %79 = arith.divf %77, %78 : vector<2x256xf32>
    %cst_22 = arith.constant 2.000000e+00 : f32
    %80 = vector.broadcast %cst_22 : f32 to vector<2x256xf32>
    %81 = arith.mulf %80, %79 : vector<2x256xf32>
    %cst_23 = arith.constant 1.000000e+00 : f32
    %82 = vector.broadcast %cst_23 : f32 to vector<2x256xf32>
    %83 = arith.subf %81, %82 : vector<2x256xf32>
    %84 = arith.select %22, %83, %79 : vector<2x256xi1>, vector<2x256xf32>
    %85 = vector.extract_strided_slice %84 {offsets = [0, 0], sizes = [2, 64], strides = [1, 1]} : vector<2x256xf32> to vector<2x64xf32>
    %86 = vector.extract_strided_slice %84 {offsets = [0, 64], sizes = [2, 64], strides = [1, 1]} : vector<2x256xf32> to vector<2x64xf32>
    %87 = vector.extract_strided_slice %84 {offsets = [0, 128], sizes = [2, 64], strides = [1, 1]} : vector<2x256xf32> to vector<2x64xf32>
    %88 = vector.extract_strided_slice %84 {offsets = [0, 192], sizes = [2, 64], strides = [1, 1]} : vector<2x256xf32> to vector<2x64xf32>
    %89 = arith.mulf %86, %69 : vector<2x64xf32>
    %90 = arith.mulf %85, %87 : vector<2x64xf32>
    %91 = arith.addf %89, %90 : vector<2x64xf32>
    %92 = math.tanh %91 : vector<2x64xf32>
    %93 = arith.mulf %88, %92 : vector<2x64xf32>
    %c8 = arith.constant 8 : index
    %c0_24 = arith.constant 0 : index
    %94 = vector.load %arg11[%c8, %c0_24] : memref<64x64xf32, #tpu.memory_space<vmem>>, vector<2x64xf32>
    tpu.vector_store %arg11[%c8, %c0_24], %93 {strides = array<i32>} : memref<64x64xf32, #tpu.memory_space<vmem>>, vector<2x64xf32>,
    %cst_25 = arith.constant dense<0.000000e+00> : vector<2x256xf32>
    %95 = tpu.matmul %93, %28, %cst_25 {dimension_numbers = #tpu.dot_dimension_numbers<[1], [0], [0], [1], [0, 0, 1, 1], [], []>} : vector<2x64xf32>, vector<64x256xf32>, vector<2x256xf32> -> vector<2x256xf32>
    %96 = arith.addf %11, %95 : vector<2x256xf32>
    %97 = arith.negf %96 : vector<2x256xf32>
    %98 = math.exp %97 : vector<2x256xf32>
    %cst_26 = arith.constant 1.000000e+00 : f32
    %99 = vector.broadcast %cst_26 : f32 to vector<2x256xf32>
    %100 = arith.addf %99, %98 : vector<2x256xf32>
    %101 = arith.divf %99, %100 : vector<2x256xf32>
    %cst_27 = arith.constant 2.000000e+00 : f32
    %102 = vector.broadcast %cst_27 : f32 to vector<2x256xf32>
    %103 = arith.mulf %102, %101 : vector<2x256xf32>
    %cst_28 = arith.constant 1.000000e+00 : f32
    %104 = vector.broadcast %cst_28 : f32 to vector<2x256xf32>
    %105 = arith.subf %103, %104 : vector<2x256xf32>
    %106 = arith.select %22, %105, %101 : vector<2x256xi1>, vector<2x256xf32>
    %107 = vector.extract_strided_slice %106 {offsets = [0, 0], sizes = [2, 64], strides = [1, 1]} : vector<2x256xf32> to vector<2x64xf32>
    %108 = vector.extract_strided_slice %106 {offsets = [0, 64], sizes = [2, 64], strides = [1, 1]} : vector<2x256xf32> to vector<2x64xf32>
    %109 = vector.extract_strided_slice %106 {offsets = [0, 128], sizes = [2, 64], strides = [1, 1]} : vector<2x256xf32> to vector<2x64xf32>
    %110 = vector.extract_strided_slice %106 {offsets = [0, 192], sizes = [2, 64], strides = [1, 1]} : vector<2x256xf32> to vector<2x64xf32>
    %111 = arith.mulf %108, %91 : vector<2x64xf32>
    %112 = arith.mulf %107, %109 : vector<2x64xf32>
    %113 = arith.addf %111, %112 : vector<2x64xf32>
    %114 = math.tanh %113 : vector<2x64xf32>
    %115 = arith.mulf %110, %114 : vector<2x64xf32>
    %c16 = arith.constant 16 : index
    %c0_29 = arith.constant 0 : index
    %116 = vector.load %arg11[%c16, %c0_29] : memref<64x64xf32, #tpu.memory_space<vmem>>, vector<2x64xf32>
    tpu.vector_store %arg11[%c16, %c0_29], %115 {strides = array<i32>} : memref<64x64xf32, #tpu.memory_space<vmem>>, vector<2x64xf32>,
    %cst_30 = arith.constant dense<0.000000e+00> : vector<2x256xf32>
    %117 = tpu.matmul %115, %28, %cst_30 {dimension_numbers = #tpu.dot_dimension_numbers<[1], [0], [0], [1], [0, 0, 1, 1], [], []>} : vector<2x64xf32>, vector<64x256xf32>, vector<2x256xf32> -> vector<2x256xf32>
    %118 = arith.addf %12, %117 : vector<2x256xf32>
    %119 = arith.negf %118 : vector<2x256xf32>
    %120 = math.exp %119 : vector<2x256xf32>
    %cst_31 = arith.constant 1.000000e+00 : f32
    %121 = vector.broadcast %cst_31 : f32 to vector<2x256xf32>
    %122 = arith.addf %121, %120 : vector<2x256xf32>
    %123 = arith.divf %121, %122 : vector<2x256xf32>
    %cst_32 = arith.constant 2.000000e+00 : f32
    %124 = vector.broadcast %cst_32 : f32 to vector<2x256xf32>
    %125 = arith.mulf %124, %123 : vector<2x256xf32>
    %cst_33 = arith.constant 1.000000e+00 : f32
    %126 = vector.broadcast %cst_33 : f32 to vector<2x256xf32>
    %127 = arith.subf %125, %126 : vector<2x256xf32>
    %128 = arith.select %22, %127, %123 : vector<2x256xi1>, vector<2x256xf32>
    %129 = vector.extract_strided_slice %128 {offsets = [0, 0], sizes = [2, 64], strides = [1, 1]} : vector<2x256xf32> to vector<2x64xf32>
    %130 = vector.extract_strided_slice %128 {offsets = [0, 64], sizes = [2, 64], strides = [1, 1]} : vector<2x256xf32> to vector<2x64xf32>
    %131 = vector.extract_strided_slice %128 {offsets = [0, 128], sizes = [2, 64], strides = [1, 1]} : vector<2x256xf32> to vector<2x64xf32>
    %132 = vector.extract_strided_slice %128 {offsets = [0, 192], sizes = [2, 64], strides = [1, 1]} : vector<2x256xf32> to vector<2x64xf32>
    %133 = arith.mulf %130, %113 : vector<2x64xf32>
    %134 = arith.mulf %129, %131 : vector<2x64xf32>
    %135 = arith.addf %133, %134 : vector<2x64xf32>
    %136 = math.tanh %135 : vector<2x64xf32>
    %137 = arith.mulf %132, %136 : vector<2x64xf32>
    %c24 = arith.constant 24 : index
    %c0_34 = arith.constant 0 : index
    %138 = vector.load %arg11[%c24, %c0_34] : memref<64x64xf32, #tpu.memory_space<vmem>>, vector<2x64xf32>
    tpu.vector_store %arg11[%c24, %c0_34], %137 {strides = array<i32>} : memref<64x64xf32, #tpu.memory_space<vmem>>, vector<2x64xf32>,
    %cst_35 = arith.constant dense<0.000000e+00> : vector<2x256xf32>
    %139 = tpu.matmul %137, %28, %cst_35 {dimension_numbers = #tpu.dot_dimension_numbers<[1], [0], [0], [1], [0, 0, 1, 1], [], []>} : vector<2x64xf32>, vector<64x256xf32>, vector<2x256xf32> -> vector<2x256xf32>
    %140 = arith.addf %13, %139 : vector<2x256xf32>
    %141 = arith.negf %140 : vector<2x256xf32>
    %142 = math.exp %141 : vector<2x256xf32>
    %cst_36 = arith.constant 1.000000e+00 : f32
    %143 = vector.broadcast %cst_36 : f32 to vector<2x256xf32>
    %144 = arith.addf %143, %142 : vector<2x256xf32>
    %145 = arith.divf %143, %144 : vector<2x256xf32>
    %cst_37 = arith.constant 2.000000e+00 : f32
    %146 = vector.broadcast %cst_37 : f32 to vector<2x256xf32>
    %147 = arith.mulf %146, %145 : vector<2x256xf32>
    %cst_38 = arith.constant 1.000000e+00 : f32
    %148 = vector.broadcast %cst_38 : f32 to vector<2x256xf32>
    %149 = arith.subf %147, %148 : vector<2x256xf32>
    %150 = arith.select %22, %149, %145 : vector<2x256xi1>, vector<2x256xf32>
    %151 = vector.extract_strided_slice %150 {offsets = [0, 0], sizes = [2, 64], strides = [1, 1]} : vector<2x256xf32> to vector<2x64xf32>
    %152 = vector.extract_strided_slice %150 {offsets = [0, 64], sizes = [2, 64], strides = [1, 1]} : vector<2x256xf32> to vector<2x64xf32>
    %153 = vector.extract_strided_slice %150 {offsets = [0, 128], sizes = [2, 64], strides = [1, 1]} : vector<2x256xf32> to vector<2x64xf32>
    %154 = vector.extract_strided_slice %150 {offsets = [0, 192], sizes = [2, 64], strides = [1, 1]} : vector<2x256xf32> to vector<2x64xf32>
    %155 = arith.mulf %152, %135 : vector<2x64xf32>
    %156 = arith.mulf %151, %153 : vector<2x64xf32>
    %157 = arith.addf %155, %156 : vector<2x64xf32>
    %158 = math.tanh %157 : vector<2x64xf32>
    %159 = arith.mulf %154, %158 : vector<2x64xf32>
    %c32 = arith.constant 32 : index
    %c0_39 = arith.constant 0 : index
    %160 = vector.load %arg11[%c32, %c0_39] : memref<64x64xf32, #tpu.memory_space<vmem>>, vector<2x64xf32>
    tpu.vector_store %arg11[%c32, %c0_39], %159 {strides = array<i32>} : memref<64x64xf32, #tpu.memory_space<vmem>>, vector<2x64xf32>,
    %cst_40 = arith.constant dense<0.000000e+00> : vector<2x256xf32>
    %161 = tpu.matmul %159, %28, %cst_40 {dimension_numbers = #tpu.dot_dimension_numbers<[1], [0], [0], [1], [0, 0, 1, 1], [], []>} : vector<2x64xf32>, vector<64x256xf32>, vector<2x256xf32> -> vector<2x256xf32>
    %162 = arith.addf %14, %161 : vector<2x256xf32>
    %163 = arith.negf %162 : vector<2x256xf32>
    %164 = math.exp %163 : vector<2x256xf32>
    %cst_41 = arith.constant 1.000000e+00 : f32
    %165 = vector.broadcast %cst_41 : f32 to vector<2x256xf32>
    %166 = arith.addf %165, %164 : vector<2x256xf32>
    %167 = arith.divf %165, %166 : vector<2x256xf32>
    %cst_42 = arith.constant 2.000000e+00 : f32
    %168 = vector.broadcast %cst_42 : f32 to vector<2x256xf32>
    %169 = arith.mulf %168, %167 : vector<2x256xf32>
    %cst_43 = arith.constant 1.000000e+00 : f32
    %170 = vector.broadcast %cst_43 : f32 to vector<2x256xf32>
    %171 = arith.subf %169, %170 : vector<2x256xf32>
    %172 = arith.select %22, %171, %167 : vector<2x256xi1>, vector<2x256xf32>
    %173 = vector.extract_strided_slice %172 {offsets = [0, 0], sizes = [2, 64], strides = [1, 1]} : vector<2x256xf32> to vector<2x64xf32>
    %174 = vector.extract_strided_slice %172 {offsets = [0, 64], sizes = [2, 64], strides = [1, 1]} : vector<2x256xf32> to vector<2x64xf32>
    %175 = vector.extract_strided_slice %172 {offsets = [0, 128], sizes = [2, 64], strides = [1, 1]} : vector<2x256xf32> to vector<2x64xf32>
    %176 = vector.extract_strided_slice %172 {offsets = [0, 192], sizes = [2, 64], strides = [1, 1]} : vector<2x256xf32> to vector<2x64xf32>
    %177 = arith.mulf %174, %157 : vector<2x64xf32>
    %178 = arith.mulf %173, %175 : vector<2x64xf32>
    %179 = arith.addf %177, %178 : vector<2x64xf32>
    %180 = math.tanh %179 : vector<2x64xf32>
    %181 = arith.mulf %176, %180 : vector<2x64xf32>
    %c40 = arith.constant 40 : index
    %c0_44 = arith.constant 0 : index
    %182 = vector.load %arg11[%c40, %c0_44] : memref<64x64xf32, #tpu.memory_space<vmem>>, vector<2x64xf32>
    tpu.vector_store %arg11[%c40, %c0_44], %181 {strides = array<i32>} : memref<64x64xf32, #tpu.memory_space<vmem>>, vector<2x64xf32>,
    %cst_45 = arith.constant dense<0.000000e+00> : vector<2x256xf32>
    %183 = tpu.matmul %181, %28, %cst_45 {dimension_numbers = #tpu.dot_dimension_numbers<[1], [0], [0], [1], [0, 0, 1, 1], [], []>} : vector<2x64xf32>, vector<64x256xf32>, vector<2x256xf32> -> vector<2x256xf32>
    %184 = arith.addf %15, %183 : vector<2x256xf32>
    %185 = arith.negf %184 : vector<2x256xf32>
    %186 = math.exp %185 : vector<2x256xf32>
    %cst_46 = arith.constant 1.000000e+00 : f32
    %187 = vector.broadcast %cst_46 : f32 to vector<2x256xf32>
    %188 = arith.addf %187, %186 : vector<2x256xf32>
    %189 = arith.divf %187, %188 : vector<2x256xf32>
    %cst_47 = arith.constant 2.000000e+00 : f32
    %190 = vector.broadcast %cst_47 : f32 to vector<2x256xf32>
    %191 = arith.mulf %190, %189 : vector<2x256xf32>
    %cst_48 = arith.constant 1.000000e+00 : f32
    %192 = vector.broadcast %cst_48 : f32 to vector<2x256xf32>
    %193 = arith.subf %191, %192 : vector<2x256xf32>
    %194 = arith.select %22, %193, %189 : vector<2x256xi1>, vector<2x256xf32>
    %195 = vector.extract_strided_slice %194 {offsets = [0, 0], sizes = [2, 64], strides = [1, 1]} : vector<2x256xf32> to vector<2x64xf32>
    %196 = vector.extract_strided_slice %194 {offsets = [0, 64], sizes = [2, 64], strides = [1, 1]} : vector<2x256xf32> to vector<2x64xf32>
    %197 = vector.extract_strided_slice %194 {offsets = [0, 128], sizes = [2, 64], strides = [1, 1]} : vector<2x256xf32> to vector<2x64xf32>
    %198 = vector.extract_strided_slice %194 {offsets = [0, 192], sizes = [2, 64], strides = [1, 1]} : vector<2x256xf32> to vector<2x64xf32>
    %199 = arith.mulf %196, %179 : vector<2x64xf32>
    %200 = arith.mulf %195, %197 : vector<2x64xf32>
    %201 = arith.addf %199, %200 : vector<2x64xf32>
    %202 = math.tanh %201 : vector<2x64xf32>
    %203 = arith.mulf %198, %202 : vector<2x64xf32>
    %c48 = arith.constant 48 : index
    %c0_49 = arith.constant 0 : index
    %204 = vector.load %arg11[%c48, %c0_49] : memref<64x64xf32, #tpu.memory_space<vmem>>, vector<2x64xf32>
    tpu.vector_store %arg11[%c48, %c0_49], %203 {strides = array<i32>} : memref<64x64xf32, #tpu.memory_space<vmem>>, vector<2x64xf32>,
    %cst_50 = arith.constant dense<0.000000e+00> : vector<2x256xf32>
    %205 = tpu.matmul %203, %28, %cst_50 {dimension_numbers = #tpu.dot_dimension_numbers<[1], [0], [0], [1], [0, 0, 1, 1], [], []>} : vector<2x64xf32>, vector<64x256xf32>, vector<2x256xf32> -> vector<2x256xf32>
    %206 = arith.addf %16, %205 : vector<2x256xf32>
    %207 = arith.negf %206 : vector<2x256xf32>
    %208 = math.exp %207 : vector<2x256xf32>
    %cst_51 = arith.constant 1.000000e+00 : f32
    %209 = vector.broadcast %cst_51 : f32 to vector<2x256xf32>
    %210 = arith.addf %209, %208 : vector<2x256xf32>
    %211 = arith.divf %209, %210 : vector<2x256xf32>
    %cst_52 = arith.constant 2.000000e+00 : f32
    %212 = vector.broadcast %cst_52 : f32 to vector<2x256xf32>
    %213 = arith.mulf %212, %211 : vector<2x256xf32>
    %cst_53 = arith.constant 1.000000e+00 : f32
    %214 = vector.broadcast %cst_53 : f32 to vector<2x256xf32>
    %215 = arith.subf %213, %214 : vector<2x256xf32>
    %216 = arith.select %22, %215, %211 : vector<2x256xi1>, vector<2x256xf32>
    %217 = vector.extract_strided_slice %216 {offsets = [0, 0], sizes = [2, 64], strides = [1, 1]} : vector<2x256xf32> to vector<2x64xf32>
    %218 = vector.extract_strided_slice %216 {offsets = [0, 64], sizes = [2, 64], strides = [1, 1]} : vector<2x256xf32> to vector<2x64xf32>
    %219 = vector.extract_strided_slice %216 {offsets = [0, 128], sizes = [2, 64], strides = [1, 1]} : vector<2x256xf32> to vector<2x64xf32>
    %220 = vector.extract_strided_slice %216 {offsets = [0, 192], sizes = [2, 64], strides = [1, 1]} : vector<2x256xf32> to vector<2x64xf32>
    %221 = arith.mulf %218, %201 : vector<2x64xf32>
    %222 = arith.mulf %217, %219 : vector<2x64xf32>
    %223 = arith.addf %221, %222 : vector<2x64xf32>
    %224 = math.tanh %223 : vector<2x64xf32>
    %225 = arith.mulf %220, %224 : vector<2x64xf32>
    %c56 = arith.constant 56 : index
    %c0_54 = arith.constant 0 : index
    %226 = vector.load %arg11[%c56, %c0_54] : memref<64x64xf32, #tpu.memory_space<vmem>>, vector<2x64xf32>
    tpu.vector_store %arg11[%c56, %c0_54], %225 {strides = array<i32>} : memref<64x64xf32, #tpu.memory_space<vmem>>, vector<2x64xf32>,
    %c0_55 = arith.constant 0 : index
    %c0_56 = arith.constant 0 : index
    %227 = vector.load %arg11[%c0_55, %c0_56] : memref<64x64xf32, #tpu.memory_space<vmem>>, vector<64x64xf32>
    %c0_57 = arith.constant 0 : index
    %c0_58 = arith.constant 0 : index
    %228 = vector.load %arg4[%c0_57, %c0_58] : memref<1x64xf32, #tpu.memory_space<vmem>>, vector<1x64xf32>
    %229 = vector.broadcast %228 : vector<1x64xf32> to vector<64x64xf32>
    %230 = arith.mulf %227, %229 : vector<64x64xf32>
    %cst_59 = arith.constant dense<0.000000e+00> : vector<64xf32>
    %231 = vector.multi_reduction <add>, %230, %cst_59 [1] : vector<64x64xf32> to vector<64xf32>
    %232 = vector.shape_cast %231 : vector<64xf32> to vector<64x1xf32>
    %c0_60 = arith.constant 0 : index
    %c0_61 = arith.constant 0 : index
    %233 = vector.load %arg5[%c0_60, %c0_61] : memref<1x1xf32, #tpu.memory_space<vmem>>, vector<1x1xf32>
    %234 = vector.broadcast %233 : vector<1x1xf32> to vector<64x1xf32>
    %235 = arith.addf %232, %234 : vector<64x1xf32>
    %236 = math.tanh %235 : vector<64x1xf32>
    %237 = math.exp %236 : vector<64x1xf32>
    %238 = tpu.iota {dimensions = array<i32: 0>} : vector<2x64xi32>
    %239 = tpu.iota {dimensions = array<i32: 1>} : vector<2x64xi32>
    %c7_i32 = arith.constant 7 : i32
    %240 = vector.broadcast %c7_i32 : i32 to vector<2x64xi32>
    %241 = arith.andi %239, %240 : vector<2x64xi32>
    %242 = arith.cmpi eq, %241, %238 : vector<2x64xi32>
    %243 = arith.extui %242 : vector<2x64xi1> to vector<2x64xi32>
    %244 = arith.sitofp %243 : vector<2x64xi32> to vector<2x64xf32>
    %245 = vector.broadcast %237 : vector<64x1xf32> to vector<64x64xf32>
    %246 = arith.mulf %227, %245 : vector<64x64xf32>
    %cst_62 = arith.constant dense<0.000000e+00> : vector<2x64xf32>
    %247 = tpu.matmul %244, %246, %cst_62 {dimension_numbers = #tpu.dot_dimension_numbers<[1], [0], [0], [1], [0, 0, 1, 1], [], []>} : vector<2x64xf32>, vector<64x64xf32>, vector<2x64xf32> -> vector<2x64xf32>
    %cst_63 = arith.constant dense<0.000000e+00> : vector<2x1xf32>
    %248 = tpu.matmul %244, %237, %cst_63 {dimension_numbers = #tpu.dot_dimension_numbers<[1], [0], [0], [1], [0, 0, 1, 1], [], []>} : vector<2x64xf32>, vector<64x1xf32>, vector<2x1xf32> -> vector<2x1xf32>
    %249 = vector.extract_strided_slice %247 {offsets = [0, 32], sizes = [2, 32], strides = [1, 1]} : vector<2x64xf32> to vector<2x32xf32>
    %250 = vector.broadcast %248 : vector<2x1xf32> to vector<2x32xf32>
    %251 = arith.divf %249, %250 : vector<2x32xf32>
    %252 = vector.extract_strided_slice %2 {offsets = [14, 0], sizes = [2, 8], strides = [1, 1]} : vector<18x8xf32> to vector<2x8xf32>
    %c0_64 = arith.constant 0 : index
    %c0_65 = arith.constant 0 : index
    %253 = vector.load %arg6[%c0_64, %c0_65] : memref<8x32xf32, #tpu.memory_space<vmem>>, vector<8x32xf32>
    %cst_66 = arith.constant dense<0.000000e+00> : vector<2x32xf32>
    %254 = tpu.matmul %252, %253, %cst_66 {dimension_numbers = #tpu.dot_dimension_numbers<[1], [0], [0], [1], [0, 0, 1, 1], [], []>} : vector<2x8xf32>, vector<8x32xf32>, vector<2x32xf32> -> vector<2x32xf32>
    %c0_67 = arith.constant 0 : index
    %c0_68 = arith.constant 0 : index
    %255 = vector.load %arg7[%c0_67, %c0_68] : memref<1x32xf32, #tpu.memory_space<vmem>>, vector<1x32xf32>
    %256 = vector.broadcast %255 : vector<1x32xf32> to vector<2x32xf32>
    %257 = arith.addf %254, %256 : vector<2x32xf32>
    %cst_69 = arith.constant 1.000000e-01 : f32
    %258 = vector.broadcast %cst_69 : f32 to vector<2x32xf32>
    %259 = arith.mulf %258, %257 : vector<2x32xf32>
    %260 = arith.addf %251, %259 : vector<2x32xf32>
    %c0_70 = arith.constant 0 : index
    %c0_71 = arith.constant 0 : index
    %261 = vector.load %arg8[%c0_70, %c0_71] : memref<32x16xf32, #tpu.memory_space<vmem>>, vector<32x16xf32>
    %cst_72 = arith.constant dense<0.000000e+00> : vector<2x16xf32>
    %262 = tpu.matmul %260, %261, %cst_72 {dimension_numbers = #tpu.dot_dimension_numbers<[1], [0], [0], [1], [0, 0, 1, 1], [], []>} : vector<2x32xf32>, vector<32x16xf32>, vector<2x16xf32> -> vector<2x16xf32>
    %c0_73 = arith.constant 0 : index
    %c0_74 = arith.constant 0 : index
    %263 = vector.load %arg9[%c0_73, %c0_74] : memref<1x16xf32, #tpu.memory_space<vmem>>, vector<1x16xf32>
    %264 = vector.broadcast %263 : vector<1x16xf32> to vector<2x16xf32>
    %265 = arith.addf %262, %264 : vector<2x16xf32>
    %c0_75 = arith.constant 0 : index
    %c0_76 = arith.constant 0 : index
    %266 = vector.load %arg10[%c0_75, %c0_76] : memref<2x16xf32, #tpu.memory_space<vmem>>, vector<2x16xf32>
    tpu.vector_store %arg10[%c0_75, %c0_76], %265 {strides = array<i32>} : memref<2x16xf32, #tpu.memory_space<vmem>>, vector<2x16xf32>,
    return
  }
}

</mosaic_0001>

<llo_original>
// kernel: tpu_custom_call.1
$region0: #{tpu_custom_call.1}
  #allocation0 [shape = 'u32[]', space=smem, size = 0x4, offset = 0x4, fixed_abs, tag = 'smem constant byte address 0x4 - core index']
  #allocation1 [shape = 'u32[144,128]{1,0:T(1,128)}', space=vmem, size = 0x12000, scoped, tag = 'internal scratch']
  #allocation2 [shape = 'f32[64,64]{1,0:T(8,128)}', space=vmem, size = 0x8000, scoped, tag = 'scratch operand']
  #allocation3 [shape = 'f32[1,1]{1,0:T(1,128)S(1)}', space=vmem, size = 0x200, scoped, tag = 'scoped memory for tpu_custom_call.1']
  %s0 = inlined_call_operand.vmem [shape: f32[18,8], index: 0, kind: input, shape index: {}]
  %s1 = inlined_call_operand.vmem [shape: f32[8,256], index: 1, kind: input, shape index: {}]
  %s2 = inlined_call_operand.vmem [shape: f32[1,256], index: 2, kind: input, shape index: {}]
  %s3 = inlined_call_operand.hbm [shape: f32[64,256], index: 3, kind: input, shape index: {}]
  %s4 = inlined_call_operand.vmem [shape: f32[1,64], index: 4, kind: input, shape index: {}]
  %s5 = inlined_call_operand.<no memory space> [shape: f32[1,1], index: 5, kind: input, shape index: {}]
  %s6 = inlined_call_operand.vmem [shape: f32[8,32], index: 6, kind: input, shape index: {}]
  %s7 = inlined_call_operand.vmem [shape: f32[1,32], index: 7, kind: input, shape index: {}]
  %s8 = inlined_call_operand.vmem [shape: f32[32,16], index: 8, kind: input, shape index: {}]
  %s9 = inlined_call_operand.vmem [shape: f32[1,16], index: 9, kind: input, shape index: {}]
  %s10 = inlined_call_operand.hbm [shape: f32[2,16], index: 10, kind: output, shape index: {}]
  %s11 = sld [smem:[#allocation0]]
  $region54: #{tpu_custom_call.1} parent=0
    _
  %s13 = ssub.s32 1, %s11
  %s14 = scalar_select 0, %s13, %s11
  %v15 = vstv %s5
  %16 = vst [vmem:[#allocation3] sm:$0x1] %v15
  $region1: #{tpu_custom_call.1} parent=0
    #allocation4 [shape = 'u8[65536]{0}', space=vmem, size = 0x10000, scoped, tag = 'input window, operand 3, single buffered']
    #allocation5 [shape = 's32[1]{0}', space=sflag, size = 0x4, scoped, tag = 'scoped memory for tpu_custom_call.1']
    #allocation6 [shape = 's32[1]{0}', space=sflag, size = 0x4, scoped, tag = 'scoped memory for tpu_custom_call.1']
    #allocation7 [shape = 'u8[1024]{0}', space=vmem, size = 0x400, scoped, tag = 'output window, operand 0, single buffered']
    %17 = vsyncpa [#allocation5], 0
    %18 = vsyncpa [#allocation6], 0
    // Predicated region
    $region2: #{tpu_custom_call.1} parent=1 // pred_check
      _
    $region3: #{tpu_custom_call.1} parent=1 // pred_check_branch
      %20 = sbr.rel (0) target = $region5
    $region4: #{tpu_custom_call.1} parent=1 // pred_region
      _
    $region5: #{tpu_custom_call.1} parent=1 // pred_fallthru
      _
    // Predicated region
    $region6: #{tpu_custom_call.1} parent=1 // pred_check
      _
    $region7: #{tpu_custom_call.1} parent=1 // pred_check_branch
      %22 = sbr.rel (0) target = $region9
    $region8: #{tpu_custom_call.1} parent=1 // pred_region
      _
    $region9: #{tpu_custom_call.1} parent=1 // pred_fallthru
      _
    // Predicated region
    $region10: #{tpu_custom_call.1} parent=1 // pred_check
      _
    $region11: #{tpu_custom_call.1} parent=1 // pred_check_branch
      %24 = sbr.rel (0) target = $region13
    $region12: #{tpu_custom_call.1} parent=1 // pred_region
      _
    $region13: #{tpu_custom_call.1} parent=1 // pred_fallthru
      _
    // Predicated region
    $region14: #{tpu_custom_call.1} parent=1 // pred_check
      _
    $region15: #{tpu_custom_call.1} parent=1 // pred_check_branch
      %26 = sbr.rel (0) target = $region17
    $region16: #{tpu_custom_call.1} parent=1 // pred_region
      %s28 = ssub.s32 2048, 2048
      %29 = vsyncadd [#allocation5], %s28
      %s30 = sshll.u32 [#allocation4], 4
      %s31 = int_to_ptr.vmem [resolvable:$true] %s30
      %36 = dma.hbm_to_vmem [thread:$0]  %s3, 2048, %s31, [#allocation5], 256, 256, 16
    $region17: #{tpu_custom_call.1} parent=1 // pred_fallthru
      _
    // Predicated region
    $region18: #{tpu_custom_call.1} parent=1 // pred_check
      _
    $region19: #{tpu_custom_call.1} parent=1 // pred_check_branch
      %38 = sbr.rel (0) target = $region21
    $region20: #{tpu_custom_call.1} parent=1 // pred_region
      _
    $region21: #{tpu_custom_call.1} parent=1 // pred_fallthru
      _
    // Predicated region
    $region22: #{tpu_custom_call.1} parent=1 // pred_check
      _
    $region23: #{tpu_custom_call.1} parent=1 // pred_check_branch
      %40 = sbr.rel (0) target = $region25
    $region24: #{tpu_custom_call.1} parent=1 // pred_region
      _
    $region25: #{tpu_custom_call.1} parent=1 // pred_fallthru
      _
    // Predicated region
    $region26: #{tpu_custom_call.1} parent=1 // pred_check
      _
    $region27: #{tpu_custom_call.1} parent=1 // pred_check_branch
      %42 = sbr.rel (0) target = $region29
    $region28: #{tpu_custom_call.1} parent=1 // pred_region
      _
    $region29: #{tpu_custom_call.1} parent=1 // pred_fallthru
      _
    // Predicated region
    $region30: #{tpu_custom_call.1} parent=1 // pred_check
      _
    $region31: #{tpu_custom_call.1} parent=1 // pred_check_branch
      %44 = sbr.rel (0) target = $region33
    $region32: #{tpu_custom_call.1} parent=1 // pred_region
      _
    $region33: #{tpu_custom_call.1} parent=1 // pred_fallthru
      _
    // Predicated region
    $region34: #{tpu_custom_call.1} parent=1 // pred_check
      _
    $region35: #{tpu_custom_call.1} parent=1 // pred_check_branch
      %46 = sbr.rel (0) target = $region37
    $region36: #{tpu_custom_call.1} parent=1 // pred_region
      _
    $region37: #{tpu_custom_call.1} parent=1 // pred_fallthru
      _
    // Predicated region
    $region38: #{tpu_custom_call.1} parent=1 // pred_check
      _
    $region39: #{tpu_custom_call.1} parent=1 // pred_check_branch
      %48 = sbr.rel (0) target = $region41
    $region40: #{tpu_custom_call.1} parent=1 // pred_region
      _
    $region41: #{tpu_custom_call.1} parent=1 // pred_fallthru
      _
    // Predicated region
    $region42: #{tpu_custom_call.1} parent=1 // pred_check
      _
    $region43: #{tpu_custom_call.1} parent=1 // pred_check_branch
      %50 = sbr.rel (0) target = $region45
    $region44: #{tpu_custom_call.1} parent=1 // pred_region
      %51 = dma.done [#allocation5], 2048
    $region45: #{tpu_custom_call.1} parent=1 // pred_fallthru
      _
    %vm52 = vcmask 523264
    %53 = vst.msk [vmem:[#allocation2] sm:$0xff] %vm52, 0.0
    %54 = vst.msk [vmem:[#allocation2 + $0x8] sm:$0xff] %vm52, 0.0
    %55 = vst.msk [vmem:[#allocation2 + $0x10] sm:$0xff] %vm52, 0.0
    %56 = vst.msk [vmem:[#allocation2 + $0x18] sm:$0xff] %vm52, 0.0
    %57 = vst.msk [vmem:[#allocation2 + $0x20] sm:$0xff] %vm52, 0.0
    %58 = vst.msk [vmem:[#allocation2 + $0x28] sm:$0xff] %vm52, 0.0
    %59 = vst.msk [vmem:[#allocation2 + $0x30] sm:$0xff] %vm52, 0.0
    %60 = vst.msk [vmem:[#allocation2 + $0x38] sm:$0xff] %vm52, 0.0
    %v61 = vld [vmem:[%s0] sm:$0xff]
    %v62 = vld [vmem:[%s0 + $0x8] sm:$0xff]
    %v63 = vld [vmem:[%s0 + $0x10] sm:$0x3]
    %v64 = vld [vmem:[%s1] sm:$0xff]
    %v65 = vld [vmem:[%s1 + $0x8] sm:$0xff]
    %v66 = vld [vmem:[%s2] sm:$0x3]
    %v68 = vlaneseq
    %v69 = vshrl.u32 %v68, 7
    %v70 = vsub.s32 0, %v69
    %v71 = vrot.slane %v66, %v70
    %v72 = vlaneseq
    %v73 = vshrl.u32 %v72, 7
    %v74 = vsub.s32 1, %v73
    %v75 = vrot.slane %v66, %v74
    %vm78 = vcmask 64512
    %v80 = vsel %vm78, %v61, 0
    %v83 = vsel %vm78, %v62, 0
    %v86 = vsel %vm78, %v63, 0
    %88 = vmatprep.subr.mxu0 %v65
    %89 = vmatpush1.msra.mxu0 %v64
    %90 = vmatprep.subr.mxu0 0.0
    %91 = vmatpush1.msra.mxu0 0.0
    %92 = vmatprep.subr.mxu0 0.0
    %93 = vmatpush1.msra.mxu0 0.0
    %94 = vmatprep.subr.mxu0 0.0
    %95 = vmatpush1.msra.mxu0 0.0
    %96 = vmatprep.subr.mxu0 0.0
    %97 = vmatpush1.msra.mxu0 0.0
    %98 = vmatprep.subr.mxu0 0.0
    %99 = vmatpush1.msra.mxu0 0.0
    %100 = vmatprep.subr.mxu0 0.0
    %101 = vmatpush1.msra.mxu0 0.0
    %102 = vmatprep.subr.mxu0 0.0
    %103 = vmatpush1.msra.mxu0 0.0
    %104 = vmatprep.subr.mxu0 0.0
    %105 = vmatpush1.msra.mxu0 0.0
    %106 = vmatprep.subr.mxu0 0.0
    %107 = vmatpush1.msra.mxu0 0.0
    %108 = vmatprep.subr.mxu0 0.0
    %109 = vmatpush1.msra.mxu0 0.0
    %110 = vmatprep.subr.mxu0 0.0
    %111 = vmatpush1.msra.mxu0 0.0
    %112 = vmatprep.subr.mxu0 0.0
    %113 = vmatpush1.msra.mxu0 0.0
    %114 = vmatprep.subr.mxu0 0.0
    %115 = vmatpush1.msra.mxu0 0.0
    %116 = vmatprep.subr.mxu0 0.0
    %117 = vmatpush1.msra.mxu0 0.0
    %118 = vmatprep.subr.mxu0 0.0
    %119 = vmatpush1.msra.mxu0 0.0
    %120 = vmatprep.subr.mxu0 0.0
    %121 = vmatpush1.msra.mxu0 0.0
    %122 = vmatprep.subr.mxu0 0.0
    %123 = vmatpush1.msra.mxu0 0.0
    %124 = vmatprep.subr.mxu0 0.0
    %125 = vmatpush1.msra.mxu0 0.0
    %126 = vmatprep.subr.mxu0 0.0
    %127 = vmatpush1.msra.mxu0 0.0
    %128 = vmatprep.subr.mxu0 0.0
    %129 = vmatpush1.msra.mxu0 0.0
    %130 = vmatprep.subr.mxu0 0.0
    %131 = vmatpush1.msra.mxu0 0.0
    %132 = vmatprep.subr.mxu0 0.0
    %133 = vmatpush1.msra.mxu0 0.0
    %134 = vmatprep.subr.mxu0 0.0
    %135 = vmatpush1.msra.mxu0 0.0
    %136 = vmatprep.subr.mxu0 0.0
    %137 = vmatpush1.msra.mxu0 0.0
    %138 = vmatprep.subr.mxu0 0.0
    %139 = vmatpush1.msra.mxu0 0.0
    %140 = vmatprep.subr.mxu0 0.0
    %141 = vmatpush1.msra.mxu0 0.0
    %142 = vmatprep.subr.mxu0 0.0
    %143 = vmatpush1.msra.mxu0 0.0
    %144 = vmatprep.subr.mxu0 0.0
    %145 = vmatpush1.msra.mxu0 0.0
    %146 = vmatprep.subr.mxu0 0.0
    %147 = vmatpush1.msra.mxu0 0.0
    %148 = vmatprep.subr.mxu0 0.0
    %149 = vmatpush1.msra.mxu0 0.0
    %150 = vmatprep.subr.mxu0 0.0
    %151 = vmatpush1.msra.mxu0 0.0
    %152 = vmatprep.mubr.f32.mxu0 0.0
    %153 = vmatmul.mubr.f32.gmra.mrb[0].mxu0 %v80
    %v154 = vpop.f32.mrb[0].mxu0
    %v155 = vadd.f32 %v71, %v154
    %v156 = vpop.f32.mrb[0].mxu0
    %v157 = vadd.f32 %v75, %v156
    %158 = vmatprep.mubr.f32.mxu0 0.0
    %159 = vmatmul.mubr.f32.gmra.mrb[0].mxu0 %v83
    %v160 = vpop.f32.mrb[0].mxu0
    %v161 = vadd.f32 %v71, %v160
    %v162 = vpop.f32.mrb[0].mxu0
    %v163 = vadd.f32 %v75, %v162
    %164 = vmatprep.mubr.f32.mxu0 0.0
    %165 = vmatmul.mubr.f32.gmra.mrb[0].mxu0 %v86
    %v166 = vpop.f32.mrb[0].mxu0
    %v167 = vadd.f32 %v71, %v166
    %v168 = vpop.f32.mrb[0].mxu0
    %v169 = vadd.f32 %v75, %v168
    %170 = vdwg.mxu0
    %v171 = vlaneseq
    %v172 = vand.u32 %v171, 127
    %v173 = vadd.s32 %v172, 128
    %vm174 = vcmp.ge.s32.totalorder %v172, 128
    %vm175 = vcmp.ge.s32.totalorder %v173, 128
    %vm176 = vcmp.lt.s32.totalorder %v172, 192
    %vm177 = vcmp.lt.s32.totalorder %v173, 192
    %vm178 = vmand %vm174, %vm176
    %vm179 = vmand %vm175, %vm177
    %vm180 = vcmp.lt.s32.totalorder %v172, 32
    %v181 = vsel %vm180, 1, 0
    %v182 = vcvt.s32.f32 %v181
    %v183 = vld [vmem:[#allocation4] sm:$0xff]
    %v184 = vld [vmem:[#allocation4 + $0x8] sm:$0xff]
    %v185 = vld [vmem:[#allocation4 + $0x10] sm:$0xff]
    %v186 = vld [vmem:[#allocation4 + $0x18] sm:$0xff]
    %v187 = vld [vmem:[#allocation4 + $0x20] sm:$0xff]
    %v188 = vld [vmem:[#allocation4 + $0x28] sm:$0xff]
    %v189 = vld [vmem:[#allocation4 + $0x30] sm:$0xff]
    %v190 = vld [vmem:[#allocation4 + $0x38] sm:$0xff]
    %v191 = vld [vmem:[#allocation4 + $0x40] sm:$0xff]
    %v192 = vld [vmem:[#allocation4 + $0x48] sm:$0xff]
    %v193 = vld [vmem:[#allocation4 + $0x50] sm:$0xff]
    %v194 = vld [vmem:[#allocation4 + $0x58] sm:$0xff]
    %v195 = vld [vmem:[#allocation4 + $0x60] sm:$0xff]
    %v196 = vld [vmem:[#allocation4 + $0x68] sm:$0xff]
    %v197 = vld [vmem:[#allocation4 + $0x70] sm:$0xff]
    %v198 = vld [vmem:[#allocation4 + $0x78] sm:$0xff]
    %v199 = vxor.u32 %v155, 2147483648
    %v200 = vxor.u32 %v157, 2147483648
    %v201 = vmul.f32 %v199, 1.442695
    %v202 = vpow.pop %v201
    %v203 = vmul.f32 %v200, 1.442695
    %v204 = vpow.pop %v203
    %v205 = vadd.f32 %v202, 1.0
    %v206 = vadd.f32 %v204, 1.0
    %v207 = vrcp.pop %v205
    %v208 = vmul.f32 1.0, %v207
    %v209 = vrcp.pop %v206
    %v210 = vmul.f32 1.0, %v209
    %v211 = vmul.f32 %v208, 2.0
    %v212 = vmul.f32 %v210, 2.0
    %v213 = vsub.f32 %v211, 1.0
    %v214 = vsub.f32 %v212, 1.0
    %v215 = vsel %vm178, %v213, %v208
    %v216 = vsel %vm179, %v214, %v210
    %v217 = vmul.f32 %v215, 0.0
    %v218 = vmul.f32 %v215, %v216
    %220 = vrot.lane.b32.xlu0 %v218, 64
    %v221 = vpop.permute.xlu0 %220
    %v223 = vadd.f32 %v217, %v221
    %v224 = vtanh.pop %v223
    %v225 = vmul.f32 %v216, %v224
    %227 = vrot.lane.b32.xlu0 %v182, 64
    %v228 = vpop.permute.xlu0 %227
    %v230 = vmul.f32 %v225, %v228
    %v231 = vmul.f32 %v223, %v228
    %233 = vrot.lane.b32.xlu0 %v230, 64
    %v234 = vpop.permute.xlu0 %233
    %v235 = vsel %vm52, %v234, 0
    %237 = vmatprep.subr.mxu0 %v184
    %238 = vmatpush1.msra.mxu0 %v183
    %239 = vmatprep.subr.mxu0 %v186
    %240 = vmatpush1.msra.mxu0 %v185
    %241 = vmatprep.subr.mxu0 %v188
    %242 = vmatpush1.msra.mxu0 %v187
    %243 = vmatprep.subr.mxu0 %v190
    %244 = vmatpush1.msra.mxu0 %v189
    %245 = vmatprep.subr.mxu0 %v192
    %246 = vmatpush1.msra.mxu0 %v191
    %247 = vmatprep.subr.mxu0 %v194
    %248 = vmatpush1.msra.mxu0 %v193
    %249 = vmatprep.subr.mxu0 %v196
    %250 = vmatpush1.msra.mxu0 %v195
    %251 = vmatprep.subr.mxu0 %v198
    %252 = vmatpush1.msra.mxu0 %v197
    %253 = vmatprep.subr.mxu0 0.0
    %254 = vmatpush1.msra.mxu0 0.0
    %255 = vmatprep.subr.mxu0 0.0
    %256 = vmatpush1.msra.mxu0 0.0
    %257 = vmatprep.subr.mxu0 0.0
    %258 = vmatpush1.msra.mxu0 0.0
    %259 = vmatprep.subr.mxu0 0.0
    %260 = vmatpush1.msra.mxu0 0.0
    %261 = vmatprep.subr.mxu0 0.0
    %262 = vmatpush1.msra.mxu0 0.0
    %263 = vmatprep.subr.mxu0 0.0
    %264 = vmatpush1.msra.mxu0 0.0
    %265 = vmatprep.subr.mxu0 0.0
    %266 = vmatpush1.msra.mxu0 0.0
    %267 = vmatprep.subr.mxu0 0.0
    %268 = vmatpush1.msra.mxu0 0.0
    %269 = vmatprep.subr.mxu0 0.0
    %270 = vmatpush1.msra.mxu0 0.0
    %271 = vmatprep.subr.mxu0 0.0
    %272 = vmatpush1.msra.mxu0 0.0
    %273 = vmatprep.subr.mxu0 0.0
    %274 = vmatpush1.msra.mxu0 0.0
    %275 = vmatprep.subr.mxu0 0.0
    %276 = vmatpush1.msra.mxu0 0.0
    %277 = vmatprep.subr.mxu0 0.0
    %278 = vmatpush1.msra.mxu0 0.0
    %279 = vmatprep.subr.mxu0 0.0
    %280 = vmatpush1.msra.mxu0 0.0
    %281 = vmatprep.subr.mxu0 0.0
    %282 = vmatpush1.msra.mxu0 0.0
    %283 = vmatprep.subr.mxu0 0.0
    %284 = vmatpush1.msra.mxu0 0.0
    %285 = vmatprep.subr.mxu0 0.0
    %286 = vmatpush1.msra.mxu0 0.0
    %287 = vmatprep.subr.mxu0 0.0
    %288 = vmatpush1.msra.mxu0 0.0
    %289 = vmatprep.subr.mxu0 0.0
    %290 = vmatpush1.msra.mxu0 0.0
    %291 = vmatprep.subr.mxu0 0.0
    %292 = vmatpush1.msra.mxu0 0.0
    %293 = vmatprep.subr.mxu0 0.0
    %294 = vmatpush1.msra.mxu0 0.0
    %295 = vmatprep.subr.mxu0 0.0
    %296 = vmatpush1.msra.mxu0 0.0
    %297 = vmatprep.subr.mxu0 0.0
    %298 = vmatpush1.msra.mxu0 0.0
    %299 = vmatprep.subr.mxu0 0.0
    %300 = vmatpush1.msra.mxu0 0.0
    %301 = vmatprep.mubr.f32.mxu0 0.0
    %302 = vmatmul.mubr.f32.gmra.mrb[0].mxu0 %v235
    %v303 = vpop.f32.mrb[0].mxu0
    %v304 = vadd.f32 0.0, %v303
    %v305 = vpop.f32.mrb[0].mxu0
    %v306 = vadd.f32 0.0, %v305
    %307 = vdwg.mxu0
    %v310 = vrot.slane %v304, 6
    %v311 = vrot.slane %v306, 6
    %v314 = vadd.f32 %v155, %v310
    %v315 = vadd.f32 %v157, %v311
    %v316 = vxor.u32 %v314, 2147483648
    %v317 = vxor.u32 %v315, 2147483648
    %v318 = vmul.f32 %v316, 1.442695
    %v319 = vpow.pop %v318
    %v320 = vmul.f32 %v317, 1.442695
    %v321 = vpow.pop %v320
    %v322 = vadd.f32 %v319, 1.0
    %v323 = vadd.f32 %v321, 1.0
    %v324 = vrcp.pop %v322
    %v325 = vmul.f32 1.0, %v324
    %v326 = vrcp.pop %v323
    %v327 = vmul.f32 1.0, %v326
    %v328 = vmul.f32 %v325, 2.0
    %v329 = vmul.f32 %v327, 2.0
    %v330 = vsub.f32 %v328, 1.0
    %v331 = vsub.f32 %v329, 1.0
    %v332 = vsel %vm178, %v330, %v325
    %v333 = vsel %vm179, %v331, %v327
    %v335 = vrot.slane %v231, 6
    %v337 = vmul.f32 %v332, %v335
    %v338 = vmul.f32 %v332, %v333
    %340 = vrot.lane.b32.xlu0 %v338, 64
    %v341 = vpop.permute.xlu0 %340
    %v343 = vadd.f32 %v337, %v341
    %v344 = vtanh.pop %v343
    %v345 = vmul.f32 %v333, %v344
    %347 = vrot.lane.b32.xlu0 %v345, 64
    %v348 = vpop.permute.xlu0 %347
    %vm350 = vcmask 519170
    %351 = vst.msk [vmem:[#allocation2 - $0x2] sm:$0xc] %vm350, %v348
    %v352 = vrot.slane %v345, 2
    %353 = vrot.lane.b32.xlu0 %v352, 64
    %v354 = vpop.permute.xlu0 %353
    %v355 = vsel %vm52, %v354, 0
    %357 = vmatprep.subr.mxu0 %v184
    %358 = vmatpush1.msra.mxu0 %v183
    %359 = vmatprep.subr.mxu0 %v186
    %360 = vmatpush1.msra.mxu0 %v185
    %361 = vmatprep.subr.mxu0 %v188
    %362 = vmatpush1.msra.mxu0 %v187
    %363 = vmatprep.subr.mxu0 %v190
    %364 = vmatpush1.msra.mxu0 %v189
    %365 = vmatprep.subr.mxu0 %v192
    %366 = vmatpush1.msra.mxu0 %v191
    %367 = vmatprep.subr.mxu0 %v194
    %368 = vmatpush1.msra.mxu0 %v193
    %369 = vmatprep.subr.mxu0 %v196
    %370 = vmatpush1.msra.mxu0 %v195
    %371 = vmatprep.subr.mxu0 %v198
    %372 = vmatpush1.msra.mxu0 %v197
    %373 = vmatprep.subr.mxu0 0.0
    %374 = vmatpush1.msra.mxu0 0.0
    %375 = vmatprep.subr.mxu0 0.0
    %376 = vmatpush1.msra.mxu0 0.0
    %377 = vmatprep.subr.mxu0 0.0
    %378 = vmatpush1.msra.mxu0 0.0
    %379 = vmatprep.subr.mxu0 0.0
    %380 = vmatpush1.msra.mxu0 0.0
    %381 = vmatprep.subr.mxu0 0.0
    %382 = vmatpush1.msra.mxu0 0.0
    %383 = vmatprep.subr.mxu0 0.0
    %384 = vmatpush1.msra.mxu0 0.0
    %385 = vmatprep.subr.mxu0 0.0
    %386 = vmatpush1.msra.mxu0 0.0
    %387 = vmatprep.subr.mxu0 0.0
    %388 = vmatpush1.msra.mxu0 0.0
    %389 = vmatprep.subr.mxu0 0.0
    %390 = vmatpush1.msra.mxu0 0.0
    %391 = vmatprep.subr.mxu0 0.0
    %392 = vmatpush1.msra.mxu0 0.0
    %393 = vmatprep.subr.mxu0 0.0
    %394 = vmatpush1.msra.mxu0 0.0
    %395 = vmatprep.subr.mxu0 0.0
    %396 = vmatpush1.msra.mxu0 0.0
    %397 = vmatprep.subr.mxu0 0.0
    %398 = vmatpush1.msra.mxu0 0.0
    %399 = vmatprep.subr.mxu0 0.0
    %400 = vmatpush1.msra.mxu0 0.0
    %401 = vmatprep.subr.mxu0 0.0
    %402 = vmatpush1.msra.mxu0 0.0
    %403 = vmatprep.subr.mxu0 0.0
    %404 = vmatpush1.msra.mxu0 0.0
    %405 = vmatprep.subr.mxu0 0.0
    %406 = vmatpush1.msra.mxu0 0.0
    %407 = vmatprep.subr.mxu0 0.0
    %408 = vmatpush1.msra.mxu0 0.0
    %409 = vmatprep.subr.mxu0 0.0
    %410 = vmatpush1.msra.mxu0 0.0
    %411 = vmatprep.subr.mxu0 0.0
    %412 = vmatpush1.msra.mxu0 0.0
    %413 = vmatprep.subr.mxu0 0.0
    %414 = vmatpush1.msra.mxu0 0.0
    %415 = vmatprep.subr.mxu0 0.0
    %416 = vmatpush1.msra.mxu0 0.0
    %417 = vmatprep.subr.mxu0 0.0
    %418 = vmatpush1.msra.mxu0 0.0
    %419 = vmatprep.subr.mxu0 0.0
    %420 = vmatpush1.msra.mxu0 0.0
    %421 = vmatprep.mubr.f32.mxu0 0.0
    %422 = vmatmul.mubr.f32.gmra.mrb[0].mxu0 %v355
    %v423 = vpop.f32.mrb[0].mxu0
    %v424 = vadd.f32 0.0, %v423
    %v425 = vpop.f32.mrb[0].mxu0
    %v426 = vadd.f32 0.0, %v425
    %427 = vdwg.mxu0
    %v430 = vrot.slane %v424, 4
    %v431 = vrot.slane %v426, 4
    %v434 = vadd.f32 %v155, %v430
    %v435 = vadd.f32 %v157, %v431
    %v436 = vxor.u32 %v434, 2147483648
    %v437 = vxor.u32 %v435, 2147483648
    %v438 = vmul.f32 %v436, 1.442695
    %v439 = vpow.pop %v438
    %v440 = vmul.f32 %v437, 1.442695
    %v441 = vpow.pop %v440
    %v442 = vadd.f32 %v439, 1.0
    %v443 = vadd.f32 %v441, 1.0
    %v444 = vrcp.pop %v442
    %v445 = vmul.f32 1.0, %v444
    %v446 = vrcp.pop %v443
    %v447 = vmul.f32 1.0, %v446
    %v448 = vmul.f32 %v445, 2.0
    %v449 = vmul.f32 %v447, 2.0
    %v450 = vsub.f32 %v448, 1.0
    %v451 = vsub.f32 %v449, 1.0
    %v452 = vsel %vm178, %v450, %v445
    %v453 = vsel %vm179, %v451, %v447
    %v455 = vrot.slane %v343, 6
    %v457 = vmul.f32 %v452, %v455
    %v458 = vmul.f32 %v452, %v453
    %460 = vrot.lane.b32.xlu0 %v458, 64
    %v461 = vpop.permute.xlu0 %460
    %v463 = vadd.f32 %v457, %v461
    %v464 = vtanh.pop %v463
    %v465 = vmul.f32 %v453, %v464
    %467 = vrot.lane.b32.xlu0 %v465, 64
    %v468 = vpop.permute.xlu0 %467
    %vm470 = vcmask 521220
    %471 = vst.msk [vmem:[#allocation2 + $0x4] sm:$0x30] %vm470, %v468
    %v472 = vrot.slane %v465, 4
    %473 = vrot.lane.b32.xlu0 %v472, 64
    %v474 = vpop.permute.xlu0 %473
    %v475 = vsel %vm52, %v474, 0
    %477 = vmatprep.subr.mxu0 %v184
    %478 = vmatpush1.msra.mxu0 %v183
    %479 = vmatprep.subr.mxu0 %v186
    %480 = vmatpush1.msra.mxu0 %v185
    %481 = vmatprep.subr.mxu0 %v188
    %482 = vmatpush1.msra.mxu0 %v187
    %483 = vmatprep.subr.mxu0 %v190
    %484 = vmatpush1.msra.mxu0 %v189
    %485 = vmatprep.subr.mxu0 %v192
    %486 = vmatpush1.msra.mxu0 %v191
    %487 = vmatprep.subr.mxu0 %v194
    %488 = vmatpush1.msra.mxu0 %v193
    %489 = vmatprep.subr.mxu0 %v196
    %490 = vmatpush1.msra.mxu0 %v195
    %491 = vmatprep.subr.mxu0 %v198
    %492 = vmatpush1.msra.mxu0 %v197
    %493 = vmatprep.subr.mxu0 0.0
    %494 = vmatpush1.msra.mxu0 0.0
    %495 = vmatprep.subr.mxu0 0.0
    %496 = vmatpush1.msra.mxu0 0.0
    %497 = vmatprep.subr.mxu0 0.0
    %498 = vmatpush1.msra.mxu0 0.0
    %499 = vmatprep.subr.mxu0 0.0
    %500 = vmatpush1.msra.mxu0 0.0
    %501 = vmatprep.subr.mxu0 0.0
    %502 = vmatpush1.msra.mxu0 0.0
    %503 = vmatprep.subr.mxu0 0.0
    %504 = vmatpush1.msra.mxu0 0.0
    %505 = vmatprep.subr.mxu0 0.0
    %506 = vmatpush1.msra.mxu0 0.0
    %507 = vmatprep.subr.mxu0 0.0
    %508 = vmatpush1.msra.mxu0 0.0
    %509 = vmatprep.subr.mxu0 0.0
    %510 = vmatpush1.msra.mxu0 0.0
    %511 = vmatprep.subr.mxu0 0.0
    %512 = vmatpush1.msra.mxu0 0.0
    %513 = vmatprep.subr.mxu0 0.0
    %514 = vmatpush1.msra.mxu0 0.0
    %515 = vmatprep.subr.mxu0 0.0
    %516 = vmatpush1.msra.mxu0 0.0
    %517 = vmatprep.subr.mxu0 0.0
    %518 = vmatpush1.msra.mxu0 0.0
    %519 = vmatprep.subr.mxu0 0.0
    %520 = vmatpush1.msra.mxu0 0.0
    %521 = vmatprep.subr.mxu0 0.0
    %522 = vmatpush1.msra.mxu0 0.0
    %523 = vmatprep.subr.mxu0 0.0
    %524 = vmatpush1.msra.mxu0 0.0
    %525 = vmatprep.subr.mxu0 0.0
    %526 = vmatpush1.msra.mxu0 0.0
    %527 = vmatprep.subr.mxu0 0.0
    %528 = vmatpush1.msra.mxu0 0.0
    %529 = vmatprep.subr.mxu0 0.0
    %530 = vmatpush1.msra.mxu0 0.0
    %531 = vmatprep.subr.mxu0 0.0
    %532 = vmatpush1.msra.mxu0 0.0
    %533 = vmatprep.subr.mxu0 0.0
    %534 = vmatpush1.msra.mxu0 0.0
    %535 = vmatprep.subr.mxu0 0.0
    %536 = vmatpush1.msra.mxu0 0.0
    %537 = vmatprep.subr.mxu0 0.0
    %538 = vmatpush1.msra.mxu0 0.0
    %539 = vmatprep.subr.mxu0 0.0
    %540 = vmatpush1.msra.mxu0 0.0
    %541 = vmatprep.mubr.f32.mxu0 0.0
    %542 = vmatmul.mubr.f32.gmra.mrb[0].mxu0 %v475
    %v543 = vpop.f32.mrb[0].mxu0
    %v544 = vadd.f32 0.0, %v543
    %v545 = vpop.f32.mrb[0].mxu0
    %v546 = vadd.f32 0.0, %v545
    %547 = vdwg.mxu0
    %v550 = vrot.slane %v544, 2
    %v551 = vrot.slane %v546, 2
    %v554 = vadd.f32 %v155, %v550
    %v555 = vadd.f32 %v157, %v551
    %v556 = vxor.u32 %v554, 2147483648
    %v557 = vxor.u32 %v555, 2147483648
    %v558 = vmul.f32 %v556, 1.442695
    %v559 = vpow.pop %v558
    %v560 = vmul.f32 %v557, 1.442695
    %v561 = vpow.pop %v560
    %v562 = vadd.f32 %v559, 1.0
    %v563 = vadd.f32 %v561, 1.0
    %v564 = vrcp.pop %v562
    %v565 = vmul.f32 1.0, %v564
    %v566 = vrcp.pop %v563
    %v567 = vmul.f32 1.0, %v566
    %v568 = vmul.f32 %v565, 2.0
    %v569 = vmul.f32 %v567, 2.0
    %v570 = vsub.f32 %v568, 1.0
    %v571 = vsub.f32 %v569, 1.0
    %v572 = vsel %vm178, %v570, %v565
    %v573 = vsel %vm179, %v571, %v567
    %v575 = vrot.slane %v463, 6
    %v577 = vmul.f32 %v572, %v575
    %v578 = vmul.f32 %v572, %v573
    %580 = vrot.lane.b32.xlu0 %v578, 64
    %v581 = vpop.permute.xlu0 %580
    %v583 = vadd.f32 %v577, %v581
    %v584 = vtanh.pop %v583
    %v585 = vmul.f32 %v573, %v584
    %587 = vrot.lane.b32.xlu0 %v585, 64
    %v588 = vpop.permute.xlu0 %587
    %vm590 = vcmask 523270
    %591 = vst.msk [vmem:[#allocation2 + $0xa] sm:$0xc0] %vm590, %v588
    %v592 = vrot.slane %v585, 6
    %593 = vrot.lane.b32.xlu0 %v592, 64
    %v594 = vpop.permute.xlu0 %593
    %v595 = vsel %vm52, %v594, 0
    %597 = vmatprep.subr.mxu0 %v184
    %598 = vmatpush1.msra.mxu0 %v183
    %599 = vmatprep.subr.mxu0 %v186
    %600 = vmatpush1.msra.mxu0 %v185
    %601 = vmatprep.subr.mxu0 %v188
    %602 = vmatpush1.msra.mxu0 %v187
    %603 = vmatprep.subr.mxu0 %v190
    %604 = vmatpush1.msra.mxu0 %v189
    %605 = vmatprep.subr.mxu0 %v192
    %606 = vmatpush1.msra.mxu0 %v191
    %607 = vmatprep.subr.mxu0 %v194
    %608 = vmatpush1.msra.mxu0 %v193
    %609 = vmatprep.subr.mxu0 %v196
    %610 = vmatpush1.msra.mxu0 %v195
    %611 = vmatprep.subr.mxu0 %v198
    %612 = vmatpush1.msra.mxu0 %v197
    %613 = vmatprep.subr.mxu0 0.0
    %614 = vmatpush1.msra.mxu0 0.0
    %615 = vmatprep.subr.mxu0 0.0
    %616 = vmatpush1.msra.mxu0 0.0
    %617 = vmatprep.subr.mxu0 0.0
    %618 = vmatpush1.msra.mxu0 0.0
    %619 = vmatprep.subr.mxu0 0.0
    %620 = vmatpush1.msra.mxu0 0.0
    %621 = vmatprep.subr.mxu0 0.0
    %622 = vmatpush1.msra.mxu0 0.0
    %623 = vmatprep.subr.mxu0 0.0
    %624 = vmatpush1.msra.mxu0 0.0
    %625 = vmatprep.subr.mxu0 0.0
    %626 = vmatpush1.msra.mxu0 0.0
    %627 = vmatprep.subr.mxu0 0.0
    %628 = vmatpush1.msra.mxu0 0.0
    %629 = vmatprep.subr.mxu0 0.0
    %630 = vmatpush1.msra.mxu0 0.0
    %631 = vmatprep.subr.mxu0 0.0
    %632 = vmatpush1.msra.mxu0 0.0
    %633 = vmatprep.subr.mxu0 0.0
    %634 = vmatpush1.msra.mxu0 0.0
    %635 = vmatprep.subr.mxu0 0.0
    %636 = vmatpush1.msra.mxu0 0.0
    %637 = vmatprep.subr.mxu0 0.0
    %638 = vmatpush1.msra.mxu0 0.0
    %639 = vmatprep.subr.mxu0 0.0
    %640 = vmatpush1.msra.mxu0 0.0
    %641 = vmatprep.subr.mxu0 0.0
    %642 = vmatpush1.msra.mxu0 0.0
    %643 = vmatprep.subr.mxu0 0.0
    %644 = vmatpush1.msra.mxu0 0.0
    %645 = vmatprep.subr.mxu0 0.0
    %646 = vmatpush1.msra.mxu0 0.0
    %647 = vmatprep.subr.mxu0 0.0
    %648 = vmatpush1.msra.mxu0 0.0
    %649 = vmatprep.subr.mxu0 0.0
    %650 = vmatpush1.msra.mxu0 0.0
    %651 = vmatprep.subr.mxu0 0.0
    %652 = vmatpush1.msra.mxu0 0.0
    %653 = vmatprep.subr.mxu0 0.0
    %654 = vmatpush1.msra.mxu0 0.0
    %655 = vmatprep.subr.mxu0 0.0
    %656 = vmatpush1.msra.mxu0 0.0
    %657 = vmatprep.subr.mxu0 0.0
    %658 = vmatpush1.msra.mxu0 0.0
    %659 = vmatprep.subr.mxu0 0.0
    %660 = vmatpush1.msra.mxu0 0.0
    %661 = vmatprep.mubr.f32.mxu0 0.0
    %662 = vmatmul.mubr.f32.gmra.mrb[0].mxu0 %v595
    %v663 = vpop.f32.mrb[0].mxu0
    %v664 = vadd.f32 0.0, %v663
    %v665 = vpop.f32.mrb[0].mxu0
    %v666 = vadd.f32 0.0, %v665
    %667 = vdwg.mxu0
    %v668 = vadd.f32 %v161, %v664
    %v669 = vadd.f32 %v163, %v666
    %v670 = vxor.u32 %v668, 2147483648
    %v671 = vxor.u32 %v669, 2147483648
    %v672 = vmul.f32 %v670, 1.442695
    %v673 = vpow.pop %v672
    %v674 = vmul.f32 %v671, 1.442695
    %v675 = vpow.pop %v674
    %v676 = vadd.f32 %v673, 1.0
    %v677 = vadd.f32 %v675, 1.0
    %v678 = vrcp.pop %v676
    %v679 = vmul.f32 1.0, %v678
    %v680 = vrcp.pop %v677
    %v681 = vmul.f32 1.0, %v680
    %v682 = vmul.f32 %v679, 2.0
    %v683 = vmul.f32 %v681, 2.0
    %v684 = vsub.f32 %v682, 1.0
    %v685 = vsub.f32 %v683, 1.0
    %v686 = vsel %vm178, %v684, %v679
    %v687 = vsel %vm179, %v685, %v681
    %v689 = vrot.slane %v583, 6
    %v691 = vmul.f32 %v686, %v689
    %v692 = vmul.f32 %v686, %v687
    %694 = vrot.lane.b32.xlu0 %v692, 64
    %v695 = vpop.permute.xlu0 %694
    %v697 = vadd.f32 %v691, %v695
    %v698 = vtanh.pop %v697
    %v699 = vmul.f32 %v687, %v698
    %701 = vrot.lane.b32.xlu0 %v699, 64
    %v702 = vpop.permute.xlu0 %701
    %vm704 = vcmask 517120
    %705 = vst.msk [vmem:[#allocation2 + $0x18] sm:$0x3] %vm704, %v702
    %v706 = vsel %vm52, %v702, 0
    %708 = vmatprep.subr.mxu0 %v184
    %709 = vmatpush1.msra.mxu0 %v183
    %710 = vmatprep.subr.mxu0 %v186
    %711 = vmatpush1.msra.mxu0 %v185
    %712 = vmatprep.subr.mxu0 %v188
    %713 = vmatpush1.msra.mxu0 %v187
    %714 = vmatprep.subr.mxu0 %v190
    %715 = vmatpush1.msra.mxu0 %v189
    %716 = vmatprep.subr.mxu0 %v192
    %717 = vmatpush1.msra.mxu0 %v191
    %718 = vmatprep.subr.mxu0 %v194
    %719 = vmatpush1.msra.mxu0 %v193
    %720 = vmatprep.subr.mxu0 %v196
    %721 = vmatpush1.msra.mxu0 %v195
    %722 = vmatprep.subr.mxu0 %v198
    %723 = vmatpush1.msra.mxu0 %v197
    %724 = vmatprep.subr.mxu0 0.0
    %725 = vmatpush1.msra.mxu0 0.0
    %726 = vmatprep.subr.mxu0 0.0
    %727 = vmatpush1.msra.mxu0 0.0
    %728 = vmatprep.subr.mxu0 0.0
    %729 = vmatpush1.msra.mxu0 0.0
    %730 = vmatprep.subr.mxu0 0.0
    %731 = vmatpush1.msra.mxu0 0.0
    %732 = vmatprep.subr.mxu0 0.0
    %733 = vmatpush1.msra.mxu0 0.0
    %734 = vmatprep.subr.mxu0 0.0
    %735 = vmatpush1.msra.mxu0 0.0
    %736 = vmatprep.subr.mxu0 0.0
    %737 = vmatpush1.msra.mxu0 0.0
    %738 = vmatprep.subr.mxu0 0.0
    %739 = vmatpush1.msra.mxu0 0.0
    %740 = vmatprep.subr.mxu0 0.0
    %741 = vmatpush1.msra.mxu0 0.0
    %742 = vmatprep.subr.mxu0 0.0
    %743 = vmatpush1.msra.mxu0 0.0
    %744 = vmatprep.subr.mxu0 0.0
    %745 = vmatpush1.msra.mxu0 0.0
    %746 = vmatprep.subr.mxu0 0.0
    %747 = vmatpush1.msra.mxu0 0.0
    %748 = vmatprep.subr.mxu0 0.0
    %749 = vmatpush1.msra.mxu0 0.0
    %750 = vmatprep.subr.mxu0 0.0
    %751 = vmatpush1.msra.mxu0 0.0
    %752 = vmatprep.subr.mxu0 0.0
    %753 = vmatpush1.msra.mxu0 0.0
    %754 = vmatprep.subr.mxu0 0.0
    %755 = vmatpush1.msra.mxu0 0.0
    %756 = vmatprep.subr.mxu0 0.0
    %757 = vmatpush1.msra.mxu0 0.0
    %758 = vmatprep.subr.mxu0 0.0
    %759 = vmatpush1.msra.mxu0 0.0
    %760 = vmatprep.subr.mxu0 0.0
    %761 = vmatpush1.msra.mxu0 0.0
    %762 = vmatprep.subr.mxu0 0.0
    %763 = vmatpush1.msra.mxu0 0.0
    %764 = vmatprep.subr.mxu0 0.0
    %765 = vmatpush1.msra.mxu0 0.0
    %766 = vmatprep.subr.mxu0 0.0
    %767 = vmatpush1.msra.mxu0 0.0
    %768 = vmatprep.subr.mxu0 0.0
    %769 = vmatpush1.msra.mxu0 0.0
    %770 = vmatprep.subr.mxu0 0.0
    %771 = vmatpush1.msra.mxu0 0.0
    %772 = vmatprep.mubr.f32.mxu0 0.0
    %773 = vmatmul.mubr.f32.gmra.mrb[0].mxu0 %v706
    %v774 = vpop.f32.mrb[0].mxu0
    %v775 = vadd.f32 0.0, %v774
    %v776 = vpop.f32.mrb[0].mxu0
    %v777 = vadd.f32 0.0, %v776
    %778 = vdwg.mxu0
    %v781 = vrot.slane %v775, 6
    %v782 = vrot.slane %v777, 6
    %v785 = vadd.f32 %v161, %v781
    %v786 = vadd.f32 %v163, %v782
    %v787 = vxor.u32 %v785, 2147483648
    %v788 = vxor.u32 %v786, 2147483648
    %v789 = vmul.f32 %v787, 1.442695
    %v790 = vpow.pop %v789
    %v791 = vmul.f32 %v788, 1.442695
    %v792 = vpow.pop %v791
    %v793 = vadd.f32 %v790, 1.0
    %v794 = vadd.f32 %v792, 1.0
    %v795 = vrcp.pop %v793
    %v796 = vmul.f32 1.0, %v795
    %v797 = vrcp.pop %v794
    %v798 = vmul.f32 1.0, %v797
    %v799 = vmul.f32 %v796, 2.0
    %v800 = vmul.f32 %v798, 2.0
    %v801 = vsub.f32 %v799, 1.0
    %v802 = vsub.f32 %v800, 1.0
    %v803 = vsel %vm178, %v801, %v796
    %v804 = vsel %vm179, %v802, %v798
    %v806 = vrot.slane %v697, 6
    %v808 = vmul.f32 %v803, %v806
    %v809 = vmul.f32 %v803, %v804
    %811 = vrot.lane.b32.xlu0 %v809, 64
    %v812 = vpop.permute.xlu0 %811
    %v814 = vadd.f32 %v808, %v812
    %v815 = vtanh.pop %v814
    %v816 = vmul.f32 %v804, %v815
    %818 = vrot.lane.b32.xlu0 %v816, 64
    %v819 = vpop.permute.xlu0 %818
    %821 = vst.msk [vmem:[#allocation2 + $0x1e] sm:$0xc] %vm350, %v819
    %v822 = vrot.slane %v816, 2
    %823 = vrot.lane.b32.xlu0 %v822, 64
    %v824 = vpop.permute.xlu0 %823
    %v825 = vsel %vm52, %v824, 0
    %827 = vmatprep.subr.mxu0 %v184
    %828 = vmatpush1.msra.mxu0 %v183
    %829 = vmatprep.subr.mxu0 %v186
    %830 = vmatpush1.msra.mxu0 %v185
    %831 = vmatprep.subr.mxu0 %v188
    %832 = vmatpush1.msra.mxu0 %v187
    %833 = vmatprep.subr.mxu0 %v190
    %834 = vmatpush1.msra.mxu0 %v189
    %835 = vmatprep.subr.mxu0 %v192
    %836 = vmatpush1.msra.mxu0 %v191
    %837 = vmatprep.subr.mxu0 %v194
    %838 = vmatpush1.msra.mxu0 %v193
    %839 = vmatprep.subr.mxu0 %v196
    %840 = vmatpush1.msra.mxu0 %v195
    %841 = vmatprep.subr.mxu0 %v198
    %842 = vmatpush1.msra.mxu0 %v197
    %843 = vmatprep.subr.mxu0 0.0
    %844 = vmatpush1.msra.mxu0 0.0
    %845 = vmatprep.subr.mxu0 0.0
    %846 = vmatpush1.msra.mxu0 0.0
    %847 = vmatprep.subr.mxu0 0.0
    %848 = vmatpush1.msra.mxu0 0.0
    %849 = vmatprep.subr.mxu0 0.0
    %850 = vmatpush1.msra.mxu0 0.0
    %851 = vmatprep.subr.mxu0 0.0
    %852 = vmatpush1.msra.mxu0 0.0
    %853 = vmatprep.subr.mxu0 0.0
    %854 = vmatpush1.msra.mxu0 0.0
    %855 = vmatprep.subr.mxu0 0.0
    %856 = vmatpush1.msra.mxu0 0.0
    %857 = vmatprep.subr.mxu0 0.0
    %858 = vmatpush1.msra.mxu0 0.0
    %859 = vmatprep.subr.mxu0 0.0
    %860 = vmatpush1.msra.mxu0 0.0
    %861 = vmatprep.subr.mxu0 0.0
    %862 = vmatpush1.msra.mxu0 0.0
    %863 = vmatprep.subr.mxu0 0.0
    %864 = vmatpush1.msra.mxu0 0.0
    %865 = vmatprep.subr.mxu0 0.0
    %866 = vmatpush1.msra.mxu0 0.0
    %867 = vmatprep.subr.mxu0 0.0
    %868 = vmatpush1.msra.mxu0 0.0
    %869 = vmatprep.subr.mxu0 0.0
    %870 = vmatpush1.msra.mxu0 0.0
    %871 = vmatprep.subr.mxu0 0.0
    %872 = vmatpush1.msra.mxu0 0.0
    %873 = vmatprep.subr.mxu0 0.0
    %874 = vmatpush1.msra.mxu0 0.0
    %875 = vmatprep.subr.mxu0 0.0
    %876 = vmatpush1.msra.mxu0 0.0
    %877 = vmatprep.subr.mxu0 0.0
    %878 = vmatpush1.msra.mxu0 0.0
    %879 = vmatprep.subr.mxu0 0.0
    %880 = vmatpush1.msra.mxu0 0.0
    %881 = vmatprep.subr.mxu0 0.0
    %882 = vmatpush1.msra.mxu0 0.0
    %883 = vmatprep.subr.mxu0 0.0
    %884 = vmatpush1.msra.mxu0 0.0
    %885 = vmatprep.subr.mxu0 0.0
    %886 = vmatpush1.msra.mxu0 0.0
    %887 = vmatprep.subr.mxu0 0.0
    %888 = vmatpush1.msra.mxu0 0.0
    %889 = vmatprep.subr.mxu0 0.0
    %890 = vmatpush1.msra.mxu0 0.0
    %891 = vmatprep.mubr.f32.mxu0 0.0
    %892 = vmatmul.mubr.f32.gmra.mrb[0].mxu0 %v825
    %v893 = vpop.f32.mrb[0].mxu0
    %v894 = vadd.f32 0.0, %v893
    %v895 = vpop.f32.mrb[0].mxu0
    %v896 = vadd.f32 0.0, %v895
    %897 = vdwg.mxu0
    %v900 = vrot.slane %v894, 4
    %v901 = vrot.slane %v896, 4
    %v904 = vadd.f32 %v161, %v900
    %v905 = vadd.f32 %v163, %v901
    %v906 = vxor.u32 %v904, 2147483648
    %v907 = vxor.u32 %v905, 2147483648
    %v908 = vmul.f32 %v906, 1.442695
    %v909 = vpow.pop %v908
    %v910 = vmul.f32 %v907, 1.442695
    %v911 = vpow.pop %v910
    %v912 = vadd.f32 %v909, 1.0
    %v913 = vadd.f32 %v911, 1.0
    %v914 = vrcp.pop %v912
    %v915 = vmul.f32 1.0, %v914
    %v916 = vrcp.pop %v913
    %v917 = vmul.f32 1.0, %v916
    %v918 = vmul.f32 %v915, 2.0
    %v919 = vmul.f32 %v917, 2.0
    %v920 = vsub.f32 %v918, 1.0
    %v921 = vsub.f32 %v919, 1.0
    %v922 = vsel %vm178, %v920, %v915
    %v923 = vsel %vm179, %v921, %v917
    %v925 = vrot.slane %v814, 6
    %v927 = vmul.f32 %v922, %v925
    %v928 = vmul.f32 %v922, %v923
    %930 = vrot.lane.b32.xlu0 %v928, 64
    %v931 = vpop.permute.xlu0 %930
    %v933 = vadd.f32 %v927, %v931
    %v934 = vtanh.pop %v933
    %v935 = vmul.f32 %v923, %v934
    %937 = vrot.lane.b32.xlu0 %v935, 64
    %v938 = vpop.permute.xlu0 %937
    %940 = vst.msk [vmem:[#allocation2 + $0x24] sm:$0x30] %vm470, %v938
    %v941 = vrot.slane %v935, 4
    %942 = vrot.lane.b32.xlu0 %v941, 64
    %v943 = vpop.permute.xlu0 %942
    %v944 = vsel %vm52, %v943, 0
    %946 = vmatprep.subr.mxu0 %v184
    %947 = vmatpush1.msra.mxu0 %v183
    %948 = vmatprep.subr.mxu0 %v186
    %949 = vmatpush1.msra.mxu0 %v185
    %950 = vmatprep.subr.mxu0 %v188
    %951 = vmatpush1.msra.mxu0 %v187
    %952 = vmatprep.subr.mxu0 %v190
    %953 = vmatpush1.msra.mxu0 %v189
    %954 = vmatprep.subr.mxu0 %v192
    %955 = vmatpush1.msra.mxu0 %v191
    %956 = vmatprep.subr.mxu0 %v194
    %957 = vmatpush1.msra.mxu0 %v193
    %958 = vmatprep.subr.mxu0 %v196
    %959 = vmatpush1.msra.mxu0 %v195
    %960 = vmatprep.subr.mxu0 %v198
    %961 = vmatpush1.msra.mxu0 %v197
    %962 = vmatprep.subr.mxu0 0.0
    %963 = vmatpush1.msra.mxu0 0.0
    %964 = vmatprep.subr.mxu0 0.0
    %965 = vmatpush1.msra.mxu0 0.0
    %966 = vmatprep.subr.mxu0 0.0
    %967 = vmatpush1.msra.mxu0 0.0
    %968 = vmatprep.subr.mxu0 0.0
    %969 = vmatpush1.msra.mxu0 0.0
    %970 = vmatprep.subr.mxu0 0.0
    %971 = vmatpush1.msra.mxu0 0.0
    %972 = vmatprep.subr.mxu0 0.0
    %973 = vmatpush1.msra.mxu0 0.0
    %974 = vmatprep.subr.mxu0 0.0
    %975 = vmatpush1.msra.mxu0 0.0
    %976 = vmatprep.subr.mxu0 0.0
    %977 = vmatpush1.msra.mxu0 0.0
    %978 = vmatprep.subr.mxu0 0.0
    %979 = vmatpush1.msra.mxu0 0.0
    %980 = vmatprep.subr.mxu0 0.0
    %981 = vmatpush1.msra.mxu0 0.0
    %982 = vmatprep.subr.mxu0 0.0
    %983 = vmatpush1.msra.mxu0 0.0
    %984 = vmatprep.subr.mxu0 0.0
    %985 = vmatpush1.msra.mxu0 0.0
    %986 = vmatprep.subr.mxu0 0.0
    %987 = vmatpush1.msra.mxu0 0.0
    %988 = vmatprep.subr.mxu0 0.0
    %989 = vmatpush1.msra.mxu0 0.0
    %990 = vmatprep.subr.mxu0 0.0
    %991 = vmatpush1.msra.mxu0 0.0
    %992 = vmatprep.subr.mxu0 0.0
    %993 = vmatpush1.msra.mxu0 0.0
    %994 = vmatprep.subr.mxu0 0.0
    %995 = vmatpush1.msra.mxu0 0.0
    %996 = vmatprep.subr.mxu0 0.0
    %997 = vmatpush1.msra.mxu0 0.0
    %998 = vmatprep.subr.mxu0 0.0
    %999 = vmatpush1.msra.mxu0 0.0
    %1000 = vmatprep.subr.mxu0 0.0
    %1001 = vmatpush1.msra.mxu0 0.0
    %1002 = vmatprep.subr.mxu0 0.0
    %1003 = vmatpush1.msra.mxu0 0.0
    %1004 = vmatprep.subr.mxu0 0.0
    %1005 = vmatpush1.msra.mxu0 0.0
    %1006 = vmatprep.subr.mxu0 0.0
    %1007 = vmatpush1.msra.mxu0 0.0
    %1008 = vmatprep.subr.mxu0 0.0
    %1009 = vmatpush1.msra.mxu0 0.0
    %1010 = vmatprep.mubr.f32.mxu0 0.0
    %1011 = vmatmul.mubr.f32.gmra.mrb[0].mxu0 %v944
    %v1012 = vpop.f32.mrb[0].mxu0
    %v1013 = vadd.f32 0.0, %v1012
    %v1014 = vpop.f32.mrb[0].mxu0
    %v1015 = vadd.f32 0.0, %v1014
    %1016 = vdwg.mxu0
    %v1019 = vrot.slane %v1013, 2
    %v1020 = vrot.slane %v1015, 2
    %v1023 = vadd.f32 %v161, %v1019
    %v1024 = vadd.f32 %v163, %v1020
    %v1025 = vxor.u32 %v1023, 2147483648
    %v1026 = vxor.u32 %v1024, 2147483648
    %v1027 = vmul.f32 %v1025, 1.442695
    %v1028 = vpow.pop %v1027
    %v1029 = vmul.f32 %v1026, 1.442695
    %v1030 = vpow.pop %v1029
    %v1031 = vadd.f32 %v1028, 1.0
    %v1032 = vadd.f32 %v1030, 1.0
    %v1033 = vrcp.pop %v1031
    %v1034 = vmul.f32 1.0, %v1033
    %v1035 = vrcp.pop %v1032
    %v1036 = vmul.f32 1.0, %v1035
    %v1037 = vmul.f32 %v1034, 2.0
    %v1038 = vmul.f32 %v1036, 2.0
    %v1039 = vsub.f32 %v1037, 1.0
    %v1040 = vsub.f32 %v1038, 1.0
    %v1041 = vsel %vm178, %v1039, %v1034
    %v1042 = vsel %vm179, %v1040, %v1036
    %v1044 = vrot.slane %v933, 6
    %v1046 = vmul.f32 %v1041, %v1044
    %v1047 = vmul.f32 %v1041, %v1042
    %1049 = vrot.lane.b32.xlu0 %v1047, 64
    %v1050 = vpop.permute.xlu0 %1049
    %v1052 = vadd.f32 %v1046, %v1050
    %v1053 = vtanh.pop %v1052
    %v1054 = vmul.f32 %v1042, %v1053
    %1056 = vrot.lane.b32.xlu0 %v1054, 64
    %v1057 = vpop.permute.xlu0 %1056
    %1059 = vst.msk [vmem:[#allocation2 + $0x2a] sm:$0xc0] %vm590, %v1057
    %v1060 = vrot.slane %v1054, 6
    %1061 = vrot.lane.b32.xlu0 %v1060, 64
    %v1062 = vpop.permute.xlu0 %1061
    %v1063 = vsel %vm52, %v1062, 0
    %1065 = vmatprep.subr.mxu0 %v184
    %1066 = vmatpush1.msra.mxu0 %v183
    %1067 = vmatprep.subr.mxu0 %v186
    %1068 = vmatpush1.msra.mxu0 %v185
    %1069 = vmatprep.subr.mxu0 %v188
    %1070 = vmatpush1.msra.mxu0 %v187
    %1071 = vmatprep.subr.mxu0 %v190
    %1072 = vmatpush1.msra.mxu0 %v189
    %1073 = vmatprep.subr.mxu0 %v192
    %1074 = vmatpush1.msra.mxu0 %v191
    %1075 = vmatprep.subr.mxu0 %v194
    %1076 = vmatpush1.msra.mxu0 %v193
    %1077 = vmatprep.subr.mxu0 %v196
    %1078 = vmatpush1.msra.mxu0 %v195
    %1079 = vmatprep.subr.mxu0 %v198
    %1080 = vmatpush1.msra.mxu0 %v197
    %1081 = vmatprep.subr.mxu0 0.0
    %1082 = vmatpush1.msra.mxu0 0.0
    %1083 = vmatprep.subr.mxu0 0.0
    %1084 = vmatpush1.msra.mxu0 0.0
    %1085 = vmatprep.subr.mxu0 0.0
    %1086 = vmatpush1.msra.mxu0 0.0
    %1087 = vmatprep.subr.mxu0 0.0
    %1088 = vmatpush1.msra.mxu0 0.0
    %1089 = vmatprep.subr.mxu0 0.0
    %1090 = vmatpush1.msra.mxu0 0.0
    %1091 = vmatprep.subr.mxu0 0.0
    %1092 = vmatpush1.msra.mxu0 0.0
    %1093 = vmatprep.subr.mxu0 0.0
    %1094 = vmatpush1.msra.mxu0 0.0
    %1095 = vmatprep.subr.mxu0 0.0
    %1096 = vmatpush1.msra.mxu0 0.0
    %1097 = vmatprep.subr.mxu0 0.0
    %1098 = vmatpush1.msra.mxu0 0.0
    %1099 = vmatprep.subr.mxu0 0.0
    %1100 = vmatpush1.msra.mxu0 0.0
    %1101 = vmatprep.subr.mxu0 0.0
    %1102 = vmatpush1.msra.mxu0 0.0
    %1103 = vmatprep.subr.mxu0 0.0
    %1104 = vmatpush1.msra.mxu0 0.0
    %1105 = vmatprep.subr.mxu0 0.0
    %1106 = vmatpush1.msra.mxu0 0.0
    %1107 = vmatprep.subr.mxu0 0.0
    %1108 = vmatpush1.msra.mxu0 0.0
    %1109 = vmatprep.subr.mxu0 0.0
    %1110 = vmatpush1.msra.mxu0 0.0
    %1111 = vmatprep.subr.mxu0 0.0
    %1112 = vmatpush1.msra.mxu0 0.0
    %1113 = vmatprep.subr.mxu0 0.0
    %1114 = vmatpush1.msra.mxu0 0.0
    %1115 = vmatprep.subr.mxu0 0.0
    %1116 = vmatpush1.msra.mxu0 0.0
    %1117 = vmatprep.subr.mxu0 0.0
    %1118 = vmatpush1.msra.mxu0 0.0
    %1119 = vmatprep.subr.mxu0 0.0
    %1120 = vmatpush1.msra.mxu0 0.0
    %1121 = vmatprep.subr.mxu0 0.0
    %1122 = vmatpush1.msra.mxu0 0.0
    %1123 = vmatprep.subr.mxu0 0.0
    %1124 = vmatpush1.msra.mxu0 0.0
    %1125 = vmatprep.subr.mxu0 0.0
    %1126 = vmatpush1.msra.mxu0 0.0
    %1127 = vmatprep.subr.mxu0 0.0
    %1128 = vmatpush1.msra.mxu0 0.0
    %1129 = vmatprep.mubr.f32.mxu0 0.0
    %1130 = vmatmul.mubr.f32.gmra.mrb[0].mxu0 %v1063
    %v1131 = vpop.f32.mrb[0].mxu0
    %v1132 = vadd.f32 0.0, %v1131
    %v1133 = vpop.f32.mrb[0].mxu0
    %v1134 = vadd.f32 0.0, %v1133
    %1135 = vdwg.mxu0
    %v1136 = vadd.f32 %v167, %v1132
    %v1137 = vadd.f32 %v169, %v1134
    %v1138 = vxor.u32 %v1136, 2147483648
    %v1139 = vxor.u32 %v1137, 2147483648
    %v1140 = vmul.f32 %v1138, 1.442695
    %v1141 = vpow.pop %v1140
    %v1142 = vmul.f32 %v1139, 1.442695
    %v1143 = vpow.pop %v1142
    %v1144 = vadd.f32 %v1141, 1.0
    %v1145 = vadd.f32 %v1143, 1.0
    %v1146 = vrcp.pop %v1144
    %v1147 = vmul.f32 1.0, %v1146
    %v1148 = vrcp.pop %v1145
    %v1149 = vmul.f32 1.0, %v1148
    %v1150 = vmul.f32 %v1147, 2.0
    %v1151 = vmul.f32 %v1149, 2.0
    %v1152 = vsub.f32 %v1150, 1.0
    %v1153 = vsub.f32 %v1151, 1.0
    %v1154 = vsel %vm178, %v1152, %v1147
    %v1155 = vsel %vm179, %v1153, %v1149
    %v1157 = vrot.slane %v1052, 6
    %v1159 = vmul.f32 %v1154, %v1157
    %v1160 = vmul.f32 %v1154, %v1155
    %1162 = vrot.lane.b32.xlu0 %v1160, 64
    %v1163 = vpop.permute.xlu0 %1162
    %v1165 = vadd.f32 %v1159, %v1163
    %v1166 = vtanh.pop %v1165
    %v1167 = vmul.f32 %v1155, %v1166
    %1169 = vrot.lane.b32.xlu0 %v1167, 64
    %v1170 = vpop.permute.xlu0 %1169
    %1172 = vst.msk [vmem:[#allocation2 + $0x38] sm:$0x3] %vm704, %v1170
    %v1173 = vld [vmem:[#allocation2] sm:$0xff]
    %v1174 = vld [vmem:[#allocation2 + $0x8] sm:$0xff]
    %v1175 = vld [vmem:[#allocation2 + $0x10] sm:$0xff]
    %v1176 = vld [vmem:[#allocation2 + $0x18] sm:$0xff]
    %v1177 = vld [vmem:[#allocation2 + $0x20] sm:$0xff]
    %v1178 = vld [vmem:[#allocation2 + $0x28] sm:$0xff]
    %v1179 = vld [vmem:[#allocation2 + $0x30] sm:$0xff]
    %v1180 = vld [vmem:[#allocation2 + $0x38] sm:$0xff]
    %v1181 = vld [vmem:[%s4] sm:$0x1]
    %v1183 = vlaneseq
    %v1184 = vshrl.u32 %v1183, 7
    %v1185 = vsub.s32 0, %v1184
    %v1186 = vrot.slane %v1181, %v1185
    %v1188 = vmul.f32 %v1173, %v1186
    %v1189 = vmul.f32 %v1174, %v1186
    %v1190 = vmul.f32 %v1175, %v1186
    %v1191 = vmul.f32 %v1176, %v1186
    %v1192 = vmul.f32 %v1177, %v1186
    %v1193 = vmul.f32 %v1178, %v1186
    %v1194 = vmul.f32 %v1179, %v1186
    %v1195 = vmul.f32 %v1180, %v1186
    %v1196 = vsel %vm52, %v1188, 0.0
    %1197 = vadd.xlane.f32.xlu0 %v1196
    %v1198 = vpop.xlane.xlu0 %1197
    %v1199 = vsel %vm52, %v1189, 0.0
    %1200 = vadd.xlane.f32.xlu0 %v1199
    %v1201 = vpop.xlane.xlu0 %1200
    %v1202 = vsel %vm52, %v1190, 0.0
    %1203 = vadd.xlane.f32.xlu0 %v1202
    %v1204 = vpop.xlane.xlu0 %1203
    %v1205 = vsel %vm52, %v1191, 0.0
    %1206 = vadd.xlane.f32.xlu0 %v1205
    %v1207 = vpop.xlane.xlu0 %1206
    %v1208 = vsel %vm52, %v1192, 0.0
    %1209 = vadd.xlane.f32.xlu0 %v1208
    %v1210 = vpop.xlane.xlu0 %1209
    %v1211 = vsel %vm52, %v1193, 0.0
    %1212 = vadd.xlane.f32.xlu0 %v1211
    %v1213 = vpop.xlane.xlu0 %1212
    %v1214 = vsel %vm52, %v1194, 0.0
    %1215 = vadd.xlane.f32.xlu0 %v1214
    %v1216 = vpop.xlane.xlu0 %1215
    %v1217 = vsel %vm52, %v1195, 0.0
    %1218 = vadd.xlane.f32.xlu0 %v1217
    %v1219 = vpop.xlane.xlu0 %1218
    %v1220 = vld [vmem:[#allocation3] sm:$0x1]
    %v1222 = vlaneseq
    %v1223 = vshrl.u32 %v1222, 7
    %v1224 = vsub.s32 0, %v1223
    %v1225 = vrot.slane %v1220, %v1224
    %v1227 = vadd.f32 %v1198, %v1225
    %v1228 = vadd.f32 %v1201, %v1225
    %v1229 = vadd.f32 %v1204, %v1225
    %v1230 = vadd.f32 %v1207, %v1225
    %v1231 = vadd.f32 %v1210, %v1225
    %v1232 = vadd.f32 %v1213, %v1225
    %v1233 = vadd.f32 %v1216, %v1225
    %v1234 = vadd.f32 %v1219, %v1225
    %v1235 = vtanh.pop %v1227
    %v1236 = vtanh.pop %v1228
    %v1237 = vtanh.pop %v1229
    %v1238 = vtanh.pop %v1230
    %v1239 = vtanh.pop %v1231
    %v1240 = vtanh.pop %v1232
    %v1241 = vtanh.pop %v1233
    %v1242 = vtanh.pop %v1234
    %v1243 = vmul.f32 %v1235, 1.442695
    %v1244 = vpow.pop %v1243
    %v1245 = vmul.f32 %v1236, 1.442695
    %v1246 = vpow.pop %v1245
    %v1247 = vmul.f32 %v1237, 1.442695
    %v1248 = vpow.pop %v1247
    %v1249 = vmul.f32 %v1238, 1.442695
    %v1250 = vpow.pop %v1249
    %v1251 = vmul.f32 %v1239, 1.442695
    %v1252 = vpow.pop %v1251
    %v1253 = vmul.f32 %v1240, 1.442695
    %v1254 = vpow.pop %v1253
    %v1255 = vmul.f32 %v1241, 1.442695
    %v1256 = vpow.pop %v1255
    %v1257 = vmul.f32 %v1242, 1.442695
    %v1258 = vpow.pop %v1257
    %v1259 = vlaneseq
    %v1260 = vshrl.u32 %v1259, 7
    %v1261 = vand.u32 %v172, 7
    %vm1262 = vcmp.eq.s32.totalorder %v1261, %v1260
    %v1263 = vsel %vm1262, 1, 0
    %v1264 = vcvt.s32.f32 %v1263
    %1266 = vset.pattern.permute.xlu0 0
    %1267 = vperm.xlu0 %1266, %v1244
    %v1268 = vpop.permute.xlu0 %1267
    %1271 = vset.pattern.permute.xlu0 0
    %1272 = vperm.xlu0 %1271, %v1246
    %v1273 = vpop.permute.xlu0 %1272
    %1276 = vset.pattern.permute.xlu0 0
    %1277 = vperm.xlu0 %1276, %v1248
    %v1278 = vpop.permute.xlu0 %1277
    %1281 = vset.pattern.permute.xlu0 0
    %1282 = vperm.xlu0 %1281, %v1250
    %v1283 = vpop.permute.xlu0 %1282
    %1286 = vset.pattern.permute.xlu0 0
    %1287 = vperm.xlu0 %1286, %v1252
    %v1288 = vpop.permute.xlu0 %1287
    %1291 = vset.pattern.permute.xlu0 0
    %1292 = vperm.xlu0 %1291, %v1254
    %v1293 = vpop.permute.xlu0 %1292
    %1296 = vset.pattern.permute.xlu0 0
    %1297 = vperm.xlu0 %1296, %v1256
    %v1298 = vpop.permute.xlu0 %1297
    %1301 = vset.pattern.permute.xlu0 0
    %1302 = vperm.xlu0 %1301, %v1258
    %v1303 = vpop.permute.xlu0 %1302
    %v1305 = vmul.f32 %v1173, %v1268
    %v1306 = vmul.f32 %v1174, %v1273
    %v1307 = vmul.f32 %v1175, %v1278
    %v1308 = vmul.f32 %v1176, %v1283
    %v1309 = vmul.f32 %v1177, %v1288
    %v1310 = vmul.f32 %v1178, %v1293
    %v1311 = vmul.f32 %v1179, %v1298
    %v1312 = vmul.f32 %v1180, %v1303
    %v1314 = vsel %vm52, %v1264, 0
    %1316 = vmatprep.subr.mxu0 0.0
    %1317 = vmatpush1.msra.mxu0 %v1305
    %1318 = vmatprep.subr.mxu0 0.0
    %1319 = vmatpush1.msra.mxu0 %v1306
    %1320 = vmatprep.subr.mxu0 0.0
    %1321 = vmatpush1.msra.mxu0 %v1307
    %1322 = vmatprep.subr.mxu0 0.0
    %1323 = vmatpush1.msra.mxu0 %v1308
    %1324 = vmatprep.subr.mxu0 0.0
    %1325 = vmatpush1.msra.mxu0 %v1309
    %1326 = vmatprep.subr.mxu0 0.0
    %1327 = vmatpush1.msra.mxu0 %v1310
    %1328 = vmatprep.subr.mxu0 0.0
    %1329 = vmatpush1.msra.mxu0 %v1311
    %1330 = vmatprep.subr.mxu0 0.0
    %1331 = vmatpush1.msra.mxu0 %v1312
    %1332 = vmatprep.subr.mxu0 0.0
    %1333 = vmatpush1.msra.mxu0 0.0
    %1334 = vmatprep.subr.mxu0 0.0
    %1335 = vmatpush1.msra.mxu0 0.0
    %1336 = vmatprep.subr.mxu0 0.0
    %1337 = vmatpush1.msra.mxu0 0.0
    %1338 = vmatprep.subr.mxu0 0.0
    %1339 = vmatpush1.msra.mxu0 0.0
    %1340 = vmatprep.subr.mxu0 0.0
    %1341 = vmatpush1.msra.mxu0 0.0
    %1342 = vmatprep.subr.mxu0 0.0
    %1343 = vmatpush1.msra.mxu0 0.0
    %1344 = vmatprep.subr.mxu0 0.0
    %1345 = vmatpush1.msra.mxu0 0.0
    %1346 = vmatprep.subr.mxu0 0.0
    %1347 = vmatpush1.msra.mxu0 0.0
    %1348 = vmatprep.subr.mxu0 0.0
    %1349 = vmatpush1.msra.mxu0 0.0
    %1350 = vmatprep.subr.mxu0 0.0
    %1351 = vmatpush1.msra.mxu0 0.0
    %1352 = vmatprep.subr.mxu0 0.0
    %1353 = vmatpush1.msra.mxu0 0.0
    %1354 = vmatprep.subr.mxu0 0.0
    %1355 = vmatpush1.msra.mxu0 0.0
    %1356 = vmatprep.subr.mxu0 0.0
    %1357 = vmatpush1.msra.mxu0 0.0
    %1358 = vmatprep.subr.mxu0 0.0
    %1359 = vmatpush1.msra.mxu0 0.0
    %1360 = vmatprep.subr.mxu0 0.0
    %1361 = vmatpush1.msra.mxu0 0.0
    %1362 = vmatprep.subr.mxu0 0.0
    %1363 = vmatpush1.msra.mxu0 0.0
    %1364 = vmatprep.subr.mxu0 0.0
    %1365 = vmatpush1.msra.mxu0 0.0
    %1366 = vmatprep.subr.mxu0 0.0
    %1367 = vmatpush1.msra.mxu0 0.0
    %1368 = vmatprep.subr.mxu0 0.0
    %1369 = vmatpush1.msra.mxu0 0.0
    %1370 = vmatprep.subr.mxu0 0.0
    %1371 = vmatpush1.msra.mxu0 0.0
    %1372 = vmatprep.subr.mxu0 0.0
    %1373 = vmatpush1.msra.mxu0 0.0
    %1374 = vmatprep.subr.mxu0 0.0
    %1375 = vmatpush1.msra.mxu0 0.0
    %1376 = vmatprep.subr.mxu0 0.0
    %1377 = vmatpush1.msra.mxu0 0.0
    %1378 = vmatprep.subr.mxu0 0.0
    %1379 = vmatpush1.msra.mxu0 0.0
    %1380 = vmatprep.mubr.f32.mxu0 0.0
    %1381 = vmatmul.mubr.f32.gmra.mrb[0].mxu0 %v1314
    %v1382 = vpop.f32.mrb[0].mxu0
    %v1383 = vadd.f32 0.0, %v1382
    %v1384 = vpop.f32.mrb[0].mxu0
    %1385 = vdwg.mxu0
    %1386 = vmatprep.subr.mxu0 0.0
    %1387 = vmatpush1.msra.mxu0 %v1244
    %1388 = vmatprep.subr.mxu0 0.0
    %1389 = vmatpush1.msra.mxu0 %v1246
    %1390 = vmatprep.subr.mxu0 0.0
    %1391 = vmatpush1.msra.mxu0 %v1248
    %1392 = vmatprep.subr.mxu0 0.0
    %1393 = vmatpush1.msra.mxu0 %v1250
    %1394 = vmatprep.subr.mxu0 0.0
    %1395 = vmatpush1.msra.mxu0 %v1252
    %1396 = vmatprep.subr.mxu0 0.0
    %1397 = vmatpush1.msra.mxu0 %v1254
    %1398 = vmatprep.subr.mxu0 0.0
    %1399 = vmatpush1.msra.mxu0 %v1256
    %1400 = vmatprep.subr.mxu0 0.0
    %1401 = vmatpush1.msra.mxu0 %v1258
    %1402 = vmatprep.subr.mxu0 0.0
    %1403 = vmatpush1.msra.mxu0 0.0
    %1404 = vmatprep.subr.mxu0 0.0
    %1405 = vmatpush1.msra.mxu0 0.0
    %1406 = vmatprep.subr.mxu0 0.0
    %1407 = vmatpush1.msra.mxu0 0.0
    %1408 = vmatprep.subr.mxu0 0.0
    %1409 = vmatpush1.msra.mxu0 0.0
    %1410 = vmatprep.subr.mxu0 0.0
    %1411 = vmatpush1.msra.mxu0 0.0
    %1412 = vmatprep.subr.mxu0 0.0
    %1413 = vmatpush1.msra.mxu0 0.0
    %1414 = vmatprep.subr.mxu0 0.0
    %1415 = vmatpush1.msra.mxu0 0.0
    %1416 = vmatprep.subr.mxu0 0.0
    %1417 = vmatpush1.msra.mxu0 0.0
    %1418 = vmatprep.subr.mxu0 0.0
    %1419 = vmatpush1.msra.mxu0 0.0
    %1420 = vmatprep.subr.mxu0 0.0
    %1421 = vmatpush1.msra.mxu0 0.0
    %1422 = vmatprep.subr.mxu0 0.0
    %1423 = vmatpush1.msra.mxu0 0.0
    %1424 = vmatprep.subr.mxu0 0.0
    %1425 = vmatpush1.msra.mxu0 0.0
    %1426 = vmatprep.subr.mxu0 0.0
    %1427 = vmatpush1.msra.mxu0 0.0
    %1428 = vmatprep.subr.mxu0 0.0
    %1429 = vmatpush1.msra.mxu0 0.0
    %1430 = vmatprep.subr.mxu0 0.0
    %1431 = vmatpush1.msra.mxu0 0.0
    %1432 = vmatprep.subr.mxu0 0.0
    %1433 = vmatpush1.msra.mxu0 0.0
    %1434 = vmatprep.subr.mxu0 0.0
    %1435 = vmatpush1.msra.mxu0 0.0
    %1436 = vmatprep.subr.mxu0 0.0
    %1437 = vmatpush1.msra.mxu0 0.0
    %1438 = vmatprep.subr.mxu0 0.0
    %1439 = vmatpush1.msra.mxu0 0.0
    %1440 = vmatprep.subr.mxu0 0.0
    %1441 = vmatpush1.msra.mxu0 0.0
    %1442 = vmatprep.subr.mxu0 0.0
    %1443 = vmatpush1.msra.mxu0 0.0
    %1444 = vmatprep.subr.mxu0 0.0
    %1445 = vmatpush1.msra.mxu0 0.0
    %1446 = vmatprep.subr.mxu0 0.0
    %1447 = vmatpush1.msra.mxu0 0.0
    %1448 = vmatprep.subr.mxu0 0.0
    %1449 = vmatpush1.msra.mxu0 0.0
    %1450 = vmatprep.mubr.f32.mxu0 0.0
    %1451 = vmatmul.mubr.f32.gmra.mrb[0].mxu0 %v1314
    %v1452 = vpop.f32.mrb[0].mxu0
    %v1453 = vadd.f32 0.0, %v1452
    %v1454 = vpop.f32.mrb[0].mxu0
    %1455 = vdwg.mxu0
    %1457 = vset.pattern.permute.xlu0 0
    %1458 = vperm.xlu0 %1457, %v1453
    %v1459 = vpop.permute.xlu0 %1458
    %v1461 = vrcp.pop %v1459
    %v1462 = vmul.f32 %v1383, %v1461
    %v1463 = vld [vmem:[%s6] sm:$0xff]
    %v1464 = vld [vmem:[%s7] sm:$0x1]
    %v1466 = vlaneseq
    %v1467 = vshrl.u32 %v1466, 7
    %v1468 = vsub.s32 0, %v1467
    %v1469 = vrot.slane %v1464, %v1468
    %v1471 = vrot.slane %v62, 6
    %v1472 = vsel %vm78, %v1471, 0
    %1474 = vmatprep.subr.mxu0 0.0
    %1475 = vmatpush1.msra.mxu0 %v1463
    %1476 = vmatprep.subr.mxu0 0.0
    %1477 = vmatpush1.msra.mxu0 0.0
    %1478 = vmatprep.subr.mxu0 0.0
    %1479 = vmatpush1.msra.mxu0 0.0
    %1480 = vmatprep.subr.mxu0 0.0
    %1481 = vmatpush1.msra.mxu0 0.0
    %1482 = vmatprep.subr.mxu0 0.0
    %1483 = vmatpush1.msra.mxu0 0.0
    %1484 = vmatprep.subr.mxu0 0.0
    %1485 = vmatpush1.msra.mxu0 0.0
    %1486 = vmatprep.subr.mxu0 0.0
    %1487 = vmatpush1.msra.mxu0 0.0
    %1488 = vmatprep.subr.mxu0 0.0
    %1489 = vmatpush1.msra.mxu0 0.0
    %1490 = vmatprep.subr.mxu0 0.0
    %1491 = vmatpush1.msra.mxu0 0.0
    %1492 = vmatprep.subr.mxu0 0.0
    %1493 = vmatpush1.msra.mxu0 0.0
    %1494 = vmatprep.subr.mxu0 0.0
    %1495 = vmatpush1.msra.mxu0 0.0
    %1496 = vmatprep.subr.mxu0 0.0
    %1497 = vmatpush1.msra.mxu0 0.0
    %1498 = vmatprep.subr.mxu0 0.0
    %1499 = vmatpush1.msra.mxu0 0.0
    %1500 = vmatprep.subr.mxu0 0.0
    %1501 = vmatpush1.msra.mxu0 0.0
    %1502 = vmatprep.subr.mxu0 0.0
    %1503 = vmatpush1.msra.mxu0 0.0
    %1504 = vmatprep.subr.mxu0 0.0
    %1505 = vmatpush1.msra.mxu0 0.0
    %1506 = vmatprep.subr.mxu0 0.0
    %1507 = vmatpush1.msra.mxu0 0.0
    %1508 = vmatprep.subr.mxu0 0.0
    %1509 = vmatpush1.msra.mxu0 0.0
    %1510 = vmatprep.subr.mxu0 0.0
    %1511 = vmatpush1.msra.mxu0 0.0
    %1512 = vmatprep.subr.mxu0 0.0
    %1513 = vmatpush1.msra.mxu0 0.0
    %1514 = vmatprep.subr.mxu0 0.0
    %1515 = vmatpush1.msra.mxu0 0.0
    %1516 = vmatprep.subr.mxu0 0.0
    %1517 = vmatpush1.msra.mxu0 0.0
    %1518 = vmatprep.subr.mxu0 0.0
    %1519 = vmatpush1.msra.mxu0 0.0
    %1520 = vmatprep.subr.mxu0 0.0
    %1521 = vmatpush1.msra.mxu0 0.0
    %1522 = vmatprep.subr.mxu0 0.0
    %1523 = vmatpush1.msra.mxu0 0.0
    %1524 = vmatprep.subr.mxu0 0.0
    %1525 = vmatpush1.msra.mxu0 0.0
    %1526 = vmatprep.subr.mxu0 0.0
    %1527 = vmatpush1.msra.mxu0 0.0
    %1528 = vmatprep.subr.mxu0 0.0
    %1529 = vmatpush1.msra.mxu0 0.0
    %1530 = vmatprep.subr.mxu0 0.0
    %1531 = vmatpush1.msra.mxu0 0.0
    %1532 = vmatprep.subr.mxu0 0.0
    %1533 = vmatpush1.msra.mxu0 0.0
    %1534 = vmatprep.subr.mxu0 0.0
    %1535 = vmatpush1.msra.mxu0 0.0
    %1536 = vmatprep.subr.mxu0 0.0
    %1537 = vmatpush1.msra.mxu0 0.0
    %1538 = vmatprep.mubr.f32.mxu0 0.0
    %1539 = vmatmul.mubr.f32.gmra.mrb[0].mxu0 %v1472
    %v1540 = vpop.f32.mrb[0].mxu0
    %v1541 = vadd.f32 %v1469, %v1540
    %v1542 = vpop.f32.mrb[0].mxu0
    %1543 = vdwg.mxu0
    %v1544 = vmul.f32 %v1541, 0.1
    %1546 = vrot.lane.b32.xlu0 %v1544, 32
    %v1547 = vpop.permute.xlu0 %1546
    %v1549 = vadd.f32 %v1462, %v1547
    %v1550 = vld [vmem:[%s8] sm:$0xff]
    %v1551 = vld [vmem:[%s8 + $0x8] sm:$0xff]
    %v1552 = vld [vmem:[%s8 + $0x10] sm:$0xff]
    %v1553 = vld [vmem:[%s8 + $0x18] sm:$0xff]
    %v1554 = vld [vmem:[%s9] sm:$0x1]
    %v1556 = vlaneseq
    %v1557 = vshrl.u32 %v1556, 7
    %v1558 = vsub.s32 0, %v1557
    %v1559 = vrot.slane %v1554, %v1558
    %1562 = vrot.lane.b32.xlu0 %v1549, 96
    %v1563 = vpop.permute.xlu0 %1562
    %vm1564 = vcmask 261120
    %v1565 = vsel %vm1564, %v1563, 0
    %1567 = vmatprep.subr.mxu0 0.0
    %1568 = vmatpush1.msra.mxu0 %v1550
    %1569 = vmatprep.subr.mxu0 0.0
    %1570 = vmatpush1.msra.mxu0 %v1551
    %1571 = vmatprep.subr.mxu0 0.0
    %1572 = vmatpush1.msra.mxu0 %v1552
    %1573 = vmatprep.subr.mxu0 0.0
    %1574 = vmatpush1.msra.mxu0 %v1553
    %1575 = vmatprep.subr.mxu0 0.0
    %1576 = vmatpush1.msra.mxu0 0.0
    %1577 = vmatprep.subr.mxu0 0.0
    %1578 = vmatpush1.msra.mxu0 0.0
    %1579 = vmatprep.subr.mxu0 0.0
    %1580 = vmatpush1.msra.mxu0 0.0
    %1581 = vmatprep.subr.mxu0 0.0
    %1582 = vmatpush1.msra.mxu0 0.0
    %1583 = vmatprep.subr.mxu0 0.0
    %1584 = vmatpush1.msra.mxu0 0.0
    %1585 = vmatprep.subr.mxu0 0.0
    %1586 = vmatpush1.msra.mxu0 0.0
    %1587 = vmatprep.subr.mxu0 0.0
    %1588 = vmatpush1.msra.mxu0 0.0
    %1589 = vmatprep.subr.mxu0 0.0
    %1590 = vmatpush1.msra.mxu0 0.0
    %1591 = vmatprep.subr.mxu0 0.0
    %1592 = vmatpush1.msra.mxu0 0.0
    %1593 = vmatprep.subr.mxu0 0.0
    %1594 = vmatpush1.msra.mxu0 0.0
    %1595 = vmatprep.subr.mxu0 0.0
    %1596 = vmatpush1.msra.mxu0 0.0
    %1597 = vmatprep.subr.mxu0 0.0
    %1598 = vmatpush1.msra.mxu0 0.0
    %1599 = vmatprep.subr.mxu0 0.0
    %1600 = vmatpush1.msra.mxu0 0.0
    %1601 = vmatprep.subr.mxu0 0.0
    %1602 = vmatpush1.msra.mxu0 0.0
    %1603 = vmatprep.subr.mxu0 0.0
    %1604 = vmatpush1.msra.mxu0 0.0
    %1605 = vmatprep.subr.mxu0 0.0
    %1606 = vmatpush1.msra.mxu0 0.0
    %1607 = vmatprep.subr.mxu0 0.0
    %1608 = vmatpush1.msra.mxu0 0.0
    %1609 = vmatprep.subr.mxu0 0.0
    %1610 = vmatpush1.msra.mxu0 0.0
    %1611 = vmatprep.subr.mxu0 0.0
    %1612 = vmatpush1.msra.mxu0 0.0
    %1613 = vmatprep.subr.mxu0 0.0
    %1614 = vmatpush1.msra.mxu0 0.0
    %1615 = vmatprep.subr.mxu0 0.0
    %1616 = vmatpush1.msra.mxu0 0.0
    %1617 = vmatprep.subr.mxu0 0.0
    %1618 = vmatpush1.msra.mxu0 0.0
    %1619 = vmatprep.subr.mxu0 0.0
    %1620 = vmatpush1.msra.mxu0 0.0
    %1621 = vmatprep.subr.mxu0 0.0
    %1622 = vmatpush1.msra.mxu0 0.0
    %1623 = vmatprep.subr.mxu0 0.0
    %1624 = vmatpush1.msra.mxu0 0.0
    %1625 = vmatprep.subr.mxu0 0.0
    %1626 = vmatpush1.msra.mxu0 0.0
    %1627 = vmatprep.subr.mxu0 0.0
    %1628 = vmatpush1.msra.mxu0 0.0
    %1629 = vmatprep.subr.mxu0 0.0
    %1630 = vmatpush1.msra.mxu0 0.0
    %1631 = vmatprep.mubr.f32.mxu0 0.0
    %1632 = vmatmul.mubr.f32.gmra.mrb[0].mxu0 %v1565
    %v1633 = vpop.f32.mrb[0].mxu0
    %v1634 = vadd.f32 %v1559, %v1633
    %v1635 = vpop.f32.mrb[0].mxu0
    %1636 = vdwg.mxu0
    %vm1637 = vcmask 123904
    %1638 = vst.msk [vmem:[#allocation7] sm:$0x3] %vm1637, %v1634
    // Predicated region
    $region46: #{tpu_custom_call.1} parent=1 // pred_check
      _
    $region47: #{tpu_custom_call.1} parent=1 // pred_check_branch
      %1640 = sbr.rel (0) target = $region49
    $region48: #{tpu_custom_call.1} parent=1 // pred_region
      %s1642 = ssub.s32 32, 32
      %1643 = vsyncadd [#allocation6], %s1642
      %s1645 = sshll.u32 [#allocation7], 4
      %s1646 = int_to_ptr.vmem [resolvable:$true] %s1645
      %1648 = dma.vmem_to_hbm [thread:$0]  %s1646, 32, %s10, [#allocation6]
    $region49: #{tpu_custom_call.1} parent=1 // pred_fallthru
      _
    // Predicated region
    $region50: #{tpu_custom_call.1} parent=1 // pred_check
      _
    $region51: #{tpu_custom_call.1} parent=1 // pred_check_branch
      %1650 = sbr.rel (0) target = $region53
    $region52: #{tpu_custom_call.1} parent=1 // pred_region
      %1651 = dma.done [#allocation6], 32
    $region53: #{tpu_custom_call.1} parent=1 // pred_fallthru
      _
    %1652 = vsyncpa [#allocation5], 1
    %1653 = vsyncpa [#allocation6], 1

</llo_original>
